<compile_context>
chip_gen: v7x
topology: tpu7x:2x2x1
jax: 0.10.0
libtpu: 0.0.40
codegen_flags: <defaults>
</compile_context>

<pallas_src>
import functools

import jax
import jax.numpy as jnp
from jax.experimental import pallas as pl
from jax.experimental.pallas import tpu as pltpu

MAX_TB = 128            # max batch rows per grid step (multiple of 8 sublanes)
OUT_PAD = 128           # lane-dense classifier output width (sliced to class_size)
TILE_VMEM_BUDGET = 48 << 20   # v7x-safe budget for double-buffered x tiles


def _round_up(n, m):
    return ((n + m - 1) // m) * m


def _choose_tb(B, S, D, itemsize):
    # Double-buffered x1 + x3 tiles (2 inputs x 2 buffers) must fit the budget.
    per_row = 2 * 2 * S * D * itemsize
    tb_cap = max(8, (TILE_VMEM_BUDGET // per_row) // 8 * 8)
    return int(min(MAX_TB, tb_cap, _round_up(B, 8)))


# ---------------------------------------------------------------------------
# Fused kernel: rep-mask + masked mean-pool encoder + classifier head
# ---------------------------------------------------------------------------
def fused_kernel(lens1_ref, inv1_ref, lens3_ref, inv3_ref,   # (TB, 1) VMEM
                 x1_ref, x3_ref,                             # (TB, S, D) bf16
                 enc_w_ref, enc_b_ref,                       # (D, E) bf16, (1, E) f32
                 w1_ref, b1_ref,                             # (4E, d_e) bf16, (1, d_e)
                 w2_ref, b2_ref,                             # (4E+d_e, d_e) bf16, (1, d_e)
                 wo_ref, bo_ref,                             # (d_e, OUT_PAD) bf16, (1, OUT_PAD)
                 out_ref):                                   # (TB, OUT_PAD) f32
    tb, seq, _ = x1_ref.shape
    E = enc_w_ref.shape[1]          # encoder output dim = 2 * d_e
    d_e = w1_ref.shape[1]

    col = jax.lax.broadcasted_iota(jnp.int32, (tb, seq), 1)

    def mm(a, w):
        # bf16 MXU operands, f32 accumulation.
        return jnp.dot(a.astype(jnp.bfloat16), w,
                       preferred_element_type=jnp.float32)

    def pool(x_ref, lens_ref, inv_ref):
        # get_rep_mask + masked mean-pool (mask from a (TB,1) vector read;
        # denominator is the exact precomputed 1/len from the wrapper).
        mask = (col < lens_ref[...]).astype(jnp.float32)          # (tb, S)
        x = x_ref[...].astype(jnp.float32)                        # (tb, S, D)
        pooled = jnp.sum(x * mask[:, :, None], axis=1)            # (tb, D)
        return pooled * inv_ref[...]                              # (tb, D)

    p1 = pool(x1_ref, lens1_ref, inv1_ref)
    p3 = pool(x3_ref, lens3_ref, inv3_ref)

    # One encoder matmul for both turns: stack along the sublane (row) axis.
    pooled = jnp.concatenate([p1, p3], axis=0)                    # (2*tb, D)
    s = mm(pooled, enc_w_ref[...]) + enc_b_ref[...]               # (2*tb, E)
    s1 = s[:tb]
    s3 = s[tb:]
    d13 = s1 - s3
    p13 = s1 * s3

    # fc1(cat([s1, s3, s1-s3, s1*s3])) -> relu, as split-weight dots.
    w1 = w1_ref[...]
    h1 = (mm(s1,  w1[0 * E:1 * E]) +
          mm(s3,  w1[1 * E:2 * E]) +
          mm(d13, w1[2 * E:3 * E]) +
          mm(p13, w1[3 * E:4 * E]) + b1_ref[...])
    h1 = jnp.maximum(h1, 0.0)

    # fc2(cat([s, h1])) -> relu, same split-weight trick.
    w2 = w2_ref[...]
    h2 = (mm(s1,  w2[0 * E:1 * E]) +
          mm(s3,  w2[1 * E:2 * E]) +
          mm(d13, w2[2 * E:3 * E]) +
          mm(p13, w2[3 * E:4 * E]) +
          mm(h1,  w2[4 * E:4 * E + d_e]) + b2_ref[...])
    h2 = jnp.maximum(h2, 0.0)

    # fc_out into a lane-dense 128-wide output block (zero-padded weights).
    out_ref[...] = mm(h2, wo_ref[...]) + bo_ref[...]


def fused_forward(x1, x3, lens1, lens3, params):
    B, S, D = x1.shape
    tb = _choose_tb(B, S, D, jnp.dtype(x1.dtype).itemsize)
    B_pad = _round_up(B, tb)

    def prep_lens(lens):
        lens = lens.astype(jnp.int32).reshape(-1, 1)
        denom = jnp.maximum(jnp.minimum(lens, S), 1).astype(jnp.float32)
        inv = 1.0 / denom                                        # exact
        if B_pad != B:
            lens = jnp.pad(lens, ((0, B_pad - B), (0, 0)))
            inv = jnp.pad(inv, ((0, B_pad - B), (0, 0)),
                          constant_values=1.0)
        return lens, inv

    lens1_col, inv1_col = prep_lens(lens1)
    lens3_col, inv3_col = prep_lens(lens3)
    if B_pad != B:
        pad_rows = B_pad - B
        x1 = jnp.pad(x1, ((0, pad_rows), (0, 0), (0, 0)))
        x3 = jnp.pad(x3, ((0, pad_rows), (0, 0), (0, 0)))

    enc_w, enc_b = params["enc_w"], params["enc_b"]
    w1, b1 = params["w1"], params["b1"]
    w2, b2 = params["w2"], params["b2"]
    wo, bo = params["wo_pad"], params["bo_pad"]

    # Explicit VMEM budget: double-buffered x tiles + (double-buffered)
    # weights + output + lens vectors + slack for in-kernel f32 temporaries.
    weight_keys = ("enc_w", "enc_b", "w1", "b1", "w2", "b2", "wo_pad", "bo_pad")
    w_bytes = sum(params[k].size * jnp.dtype(params[k].dtype).itemsize
                  for k in weight_keys)
    x_bytes = 2 * 2 * tb * S * D * jnp.dtype(x1.dtype).itemsize
    out_bytes = 2 * tb * OUT_PAD * 4
    lens_bytes = 2 * 4 * tb * 4
    temp_bytes = 4 * tb * S * D * 4          # f32 upcast / masked product temps
    vmem_limit = min(64 << 20,
                     max(16 << 20,
                         x_bytes + 2 * w_bytes + out_bytes + lens_bytes
                         + temp_bytes + (4 << 20)))

    grid_spec = pltpu.PrefetchScalarGridSpec(
        num_scalar_prefetch=0,
        grid=(B_pad // tb,),
        in_specs=[
            pl.BlockSpec((tb, 1), lambda i: (i, 0)),       # lens1
            pl.BlockSpec((tb, 1), lambda i: (i, 0)),       # inv1
            pl.BlockSpec((tb, 1), lambda i: (i, 0)),       # lens3
            pl.BlockSpec((tb, 1), lambda i: (i, 0)),       # inv3
            pl.BlockSpec((tb, S, D), lambda i: (i, 0, 0)),  # x1
            pl.BlockSpec((tb, S, D), lambda i: (i, 0, 0)),  # x3
            pl.BlockSpec(enc_w.shape, lambda i: (0, 0)),
            pl.BlockSpec(enc_b.shape, lambda i: (0, 0)),
            pl.BlockSpec(w1.shape, lambda i: (0, 0)),
            pl.BlockSpec(b1.shape, lambda i: (0, 0)),
            pl.BlockSpec(w2.shape, lambda i: (0, 0)),
            pl.BlockSpec(b2.shape, lambda i: (0, 0)),
            pl.BlockSpec(wo.shape, lambda i: (0, 0)),
            pl.BlockSpec(bo.shape, lambda i: (0, 0)),
        ],
        out_specs=pl.BlockSpec((tb, OUT_PAD), lambda i: (i, 0)),
    )

    out = pl.pallas_call(
        fused_kernel,
        out_shape=jax.ShapeDtypeStruct((B_pad, OUT_PAD), jnp.float32),
        grid_spec=grid_spec,
        compiler_params=pltpu.CompilerParams(
            dimension_semantics=("parallel",),     # batch tiles split over TCs
            vmem_limit_bytes=int(vmem_limit)),
    )(lens1_col, inv1_col, lens3_col, inv3_col,
      x1, x3, enc_w, enc_b, w1, b1, w2, b2, wo, bo)
    return out[:B]


# ---------------------------------------------------------------------------
# Parameter construction (deterministic, mirrors __init__ shapes)
# ---------------------------------------------------------------------------
def init_params(key, *, word_vocab, word_dim, char_vocab, char_dim,
                d_e, class_size):
    ks = jax.random.split(key, 10)
    enc_in = 2 * word_dim        # glove + ss embeddings concatenated
    enc_out = 2 * d_e            # simple_encoder: s_turn dim = 2*d_e
    fc_dim = enc_out * 4         # no_turn2 + simple_encoder
    u = lambda k, shp, s=0.05: jax.random.uniform(k, shp, jnp.float32, -s, s)
    glove = u(ks[0], (word_vocab, word_dim))
    ss = u(ks[1], (word_vocab, word_dim))
    wo = u(ks[8], (d_e, class_size))
    bo = jnp.zeros((1, class_size), jnp.float32)
    return {
        # Pre-concatenated bf16 embedding table: embed() is one gather, and
        # the dominant x1/x3 HBM traffic is bf16.
        "word_emb": jnp.concatenate([glove, ss], axis=-1).astype(jnp.bfloat16),
        # char path parameters kept for shape parity; unused (see TODO above).
        "char_emb": u(ks[2], (char_vocab, char_dim)).at[0].set(0.0),
        "enc_w": u(ks[3], (enc_in, enc_out)).astype(jnp.bfloat16),
        "enc_b": u(ks[4], (1, enc_out)),
        "w1": u(ks[5], (fc_dim, d_e)).astype(jnp.bfloat16),
        "b1": u(ks[6], (1, d_e)),
        "w2": u(ks[7], (fc_dim + d_e, d_e)).astype(jnp.bfloat16),
        "b2": u(ks[9], (1, d_e)),
        "wo_pad": jnp.pad(wo, ((0, 0), (0, OUT_PAD - class_size))
                          ).astype(jnp.bfloat16),
        "bo_pad": jnp.pad(bo, ((0, 0), (0, OUT_PAD - class_size))),
    }


# ---------------------------------------------------------------------------
# Forward pass (NN4EMO_SEPARATE.forward, no_turn2 + simple_encoder config)
# ---------------------------------------------------------------------------
@functools.partial(jax.jit, static_argnames=("class_size",))
def nn4emo_forward(params, seq_turn1, lens_turn1, seq_turn2, lens_turn2,
                   seq_turn3, lens_turn3, char_turn1=None, char_turn2=None,
                   char_turn3=None, *, class_size=4):
    # no_turn2: turn2 encoding never reaches the head, so its embedding /
    # encoder work is dropped explicitly (no dead DMAs or pallas calls).
    def embed(seq):
        return jnp.take(params["word_emb"], seq, axis=0)   # (B, S, 2*word_dim) bf16

    x1 = embed(seq_turn1)
    x3 = embed(seq_turn3)
    logits_pad = fused_forward(x1, x3, lens_turn1, lens_turn3, params)
    return logits_pad[:, :class_size]


# ---------------------------------------------------------------------------
# Pure-JAX reference of the same math (for a correctness sanity check)
# ---------------------------------------------------------------------------
def reference_forward(params, seq1, lens1, seq3, lens3, class_size):
    def embed(seq):
        return jnp.take(params["word_emb"], seq, axis=0).astype(jnp.float32)

    def mm(a, w):
        return jnp.dot(a.astype(jnp.bfloat16), w.astype(jnp.bfloat16),
                       preferred_element_type=jnp.float32)

    def encode(x, lens):
        S = x.shape[1]
        mask = (jnp.arange(S)[None, :] < lens[:, None]).astype(jnp.float32)
        pooled = jnp.sum(x * mask[:, :, None], axis=1)
        denom = jnp.maximum(jnp.minimum(lens[:, None], S), 1).astype(jnp.float32)
        pooled = pooled * (1.0 / denom)
        return mm(pooled, params["enc_w"]) + params["enc_b"]

    s1 = encode(embed(seq1), lens1)
    s3 = encode(embed(seq3), lens3)
    s = jnp.concatenate([s1, s3, s1 - s3, s1 * s3], -1)
    h1 = jnp.maximum(mm(s, params["w1"]) + params["b1"], 0.0)
    h2 = jnp.maximum(mm(jnp.concatenate([s, h1], -1), params["w2"])
                     + params["b2"], 0.0)
    out = mm(h2, params["wo_pad"]) + params["bo_pad"]
    return out[:, :class_size]


if __name__ == "__main__":
    # Small, deterministic, lane-aligned shapes.
    B, S = 2, 16
    WORD_VOCAB, WORD_DIM = 50, 64          # embedding dim D = 2*64 = 128
    CHAR_VOCAB, CHAR_DIM, MAX_WORD_LEN = 20, 8, 4
    D_E, CLASS_SIZE = 64, 4                # encoder dim 2*D_E = 128

    key = jax.random.PRNGKey(0)
    kp, k1, k2, k3, kc1, kc2, kc3, kb1, kb3, kbl = jax.random.split(key, 10)

    params = init_params(kp, word_vocab=WORD_VOCAB, word_dim=WORD_DIM,
                         char_vocab=CHAR_VOCAB, char_dim=CHAR_DIM,
                         d_e=D_E, class_size=CLASS_SIZE)

    seq_turn1 = jax.random.randint(k1, (B, S), 1, WORD_VOCAB, dtype=jnp.int32)
    seq_turn2 = jax.random.randint(k2, (B, S), 1, WORD_VOCAB, dtype=jnp.int32)
    seq_turn3 = jax.random.randint(k3, (B, S), 1, WORD_VOCAB, dtype=jnp.int32)
    lens_turn1 = jnp.array([S, 5], dtype=jnp.int32)
    lens_turn2 = jnp.array([6, S], dtype=jnp.int32)
    lens_turn3 = jnp.array([7, 3], dtype=jnp.int32)
    char_turn1 = jax.random.randint(kc1, (B, S, MAX_WORD_LEN), 0, CHAR_VOCAB,
                                    dtype=jnp.int32)
    char_turn2 = jax.random.randint(kc2, (B, S, MAX_WORD_LEN), 0, CHAR_VOCAB,
                                    dtype=jnp.int32)
    char_turn3 = jax.random.randint(kc3, (B, S, MAX_WORD_LEN), 0, CHAR_VOCAB,
                                    dtype=jnp.int32)

    out = nn4emo_forward(params, seq_turn1, lens_turn1, seq_turn2, lens_turn2,
                         seq_turn3, lens_turn3, char_turn1, char_turn2,
                         char_turn3, class_size=CLASS_SIZE)
    out = jax.block_until_ready(out)

    assert out.shape == (B, CLASS_SIZE) and out.dtype == jnp.float32
    assert bool(jnp.all(jnp.isfinite(out)))

    ref = reference_forward(params, seq_turn1, lens_turn1, seq_turn3,
                            lens_turn3, CLASS_SIZE)
    assert bool(jnp.allclose(out, ref, rtol=5e-2, atol=5e-3)), (out, ref)

    # Second check: a batch large enough to exercise TB=128, multi-tile grid
    # (megacore split) and padded tail rows.
    B_BIG = 160
    seq_b1 = jax.random.randint(kb1, (B_BIG, S), 1, WORD_VOCAB, dtype=jnp.int32)
    seq_b3 = jax.random.randint(kb3, (B_BIG, S), 1, WORD_VOCAB, dtype=jnp.int32)
    lens_b = jax.random.randint(kbl, (2, B_BIG), 1, S + 1, dtype=jnp.int32)
    out_b = nn4emo_forward(params, seq_b1, lens_b[0], seq_b1, lens_b[0],
                           seq_b3, lens_b[1], class_size=CLASS_SIZE)
    out_b = jax.block_until_ready(out_b)
    ref_b = reference_forward(params, seq_b1, lens_b[0], seq_b3, lens_b[1],
                              CLASS_SIZE)
    assert out_b.shape == (B_BIG, CLASS_SIZE)
    assert bool(jnp.all(jnp.isfinite(out_b)))
    assert bool(jnp.allclose(out_b, ref_b, rtol=5e-2, atol=5e-3))

    print("KERNEL_OK")
</pallas_src>

<mosaic_0001>
module attributes {stable_mosaic.version = 11 : i64} {
  func.func @fused_kernel(%arg0: i32, %arg1: memref<8x1xi32, #tpu.memory_space<vmem>>, %arg2: memref<8x1xf32, #tpu.memory_space<vmem>>, %arg3: memref<8x1xi32, #tpu.memory_space<vmem>>, %arg4: memref<8x1xf32, #tpu.memory_space<vmem>>, %arg5: memref<8x16x128xbf16, #tpu.memory_space<vmem>>, %arg6: memref<8x16x128xbf16, #tpu.memory_space<vmem>>, %arg7: memref<128x128xbf16, #tpu.memory_space<vmem>>, %arg8: memref<1x128xf32, #tpu.memory_space<vmem>>, %arg9: memref<512x64xbf16, #tpu.memory_space<vmem>>, %arg10: memref<1x64xf32, #tpu.memory_space<vmem>>, %arg11: memref<576x64xbf16, #tpu.memory_space<vmem>>, %arg12: memref<1x64xf32, #tpu.memory_space<vmem>>, %arg13: memref<64x128xbf16, #tpu.memory_space<vmem>>, %arg14: memref<1x128xf32, #tpu.memory_space<vmem>>, %arg15: memref<8x128xf32, #tpu.memory_space<vmem>>) attributes {dimension_semantics = [#tpu.dimension_semantics<parallel>], iteration_bounds = array<i64: 1>, scalar_prefetch = 0 : i64, scratch_operands = 0 : i64, tpu.core_type = #tpu.core_type<tc>, window_params = [{transform_indices = @transform_0, window_bounds = array<i64: 8, 1>}, {transform_indices = @transform_1, window_bounds = array<i64: 8, 1>}, {transform_indices = @transform_2, window_bounds = array<i64: 8, 1>}, {transform_indices = @transform_3, window_bounds = array<i64: 8, 1>}, {transform_indices = @transform_4, window_bounds = array<i64: 8, 16, 128>}, {transform_indices = @transform_5, window_bounds = array<i64: 8, 16, 128>}, {pipeline_mode = #tpu.pipeline_mode<synchronous>, transform_indices = @transform_6, window_bounds = array<i64: 128, 128>}, {pipeline_mode = #tpu.pipeline_mode<synchronous>, transform_indices = @transform_7, window_bounds = array<i64: 1, 128>}, {pipeline_mode = #tpu.pipeline_mode<synchronous>, transform_indices = @transform_8, window_bounds = array<i64: 512, 64>}, {pipeline_mode = #tpu.pipeline_mode<synchronous>, transform_indices = @transform_9, window_bounds = array<i64: 1, 64>}, {pipeline_mode = #tpu.pipeline_mode<synchronous>, transform_indices = @transform_10, window_bounds = array<i64: 576, 64>}, {pipeline_mode = #tpu.pipeline_mode<synchronous>, transform_indices = @transform_11, window_bounds = array<i64: 1, 64>}, {pipeline_mode = #tpu.pipeline_mode<synchronous>, transform_indices = @transform_12, window_bounds = array<i64: 64, 128>}, {pipeline_mode = #tpu.pipeline_mode<synchronous>, transform_indices = @transform_13, window_bounds = array<i64: 1, 128>}, {transform_indices = @transform_14, window_bounds = array<i64: 8, 128>}]} {
    %0 = tpu.iota {dimensions = array<i32: 1>} : vector<8x16xi32>
    %c0 = arith.constant 0 : index
    %c0_0 = arith.constant 0 : index
    %1 = vector.load %arg1[%c0, %c0_0] : memref<8x1xi32, #tpu.memory_space<vmem>>, vector<8x1xi32>
    %2 = vector.broadcast %1 : vector<8x1xi32> to vector<8x16xi32>
    %3 = arith.cmpi slt, %0, %2 : vector<8x16xi32>
    %4 = arith.extui %3 : vector<8x16xi1> to vector<8x16xi32>
    %5 = arith.sitofp %4 : vector<8x16xi32> to vector<8x16xf32>
    %c0_1 = arith.constant 0 : index
    %c0_2 = arith.constant 0 : index
    %c0_3 = arith.constant 0 : index
    %6 = vector.load %arg5[%c0_1, %c0_2, %c0_3] : memref<8x16x128xbf16, #tpu.memory_space<vmem>>, vector<8x16x128xbf16>
    %7 = arith.extf %6 : vector<8x16x128xbf16> to vector<8x16x128xf32>
    %8 = vector.shape_cast %5 : vector<8x16xf32> to vector<8x16x1xf32>
    %9 = vector.broadcast %8 : vector<8x16x1xf32> to vector<8x16x128xf32>
    %10 = arith.mulf %7, %9 : vector<8x16x128xf32>
    %cst = arith.constant dense<0.000000e+00> : vector<8x128xf32>
    %11 = vector.multi_reduction <add>, %10, %cst [1] : vector<8x16x128xf32> to vector<8x128xf32>
    %c0_4 = arith.constant 0 : index
    %c0_5 = arith.constant 0 : index
    %12 = vector.load %arg2[%c0_4, %c0_5] : memref<8x1xf32, #tpu.memory_space<vmem>>, vector<8x1xf32>
    %13 = vector.broadcast %12 : vector<8x1xf32> to vector<8x128xf32>
    %14 = arith.mulf %11, %13 : vector<8x128xf32>
    %c0_6 = arith.constant 0 : index
    %c0_7 = arith.constant 0 : index
    %15 = vector.load %arg3[%c0_6, %c0_7] : memref<8x1xi32, #tpu.memory_space<vmem>>, vector<8x1xi32>
    %16 = vector.broadcast %15 : vector<8x1xi32> to vector<8x16xi32>
    %17 = arith.cmpi slt, %0, %16 : vector<8x16xi32>
    %18 = arith.extui %17 : vector<8x16xi1> to vector<8x16xi32>
    %19 = arith.sitofp %18 : vector<8x16xi32> to vector<8x16xf32>
    %c0_8 = arith.constant 0 : index
    %c0_9 = arith.constant 0 : index
    %c0_10 = arith.constant 0 : index
    %20 = vector.load %arg6[%c0_8, %c0_9, %c0_10] : memref<8x16x128xbf16, #tpu.memory_space<vmem>>, vector<8x16x128xbf16>
    %21 = arith.extf %20 : vector<8x16x128xbf16> to vector<8x16x128xf32>
    %22 = vector.shape_cast %19 : vector<8x16xf32> to vector<8x16x1xf32>
    %23 = vector.broadcast %22 : vector<8x16x1xf32> to vector<8x16x128xf32>
    %24 = arith.mulf %21, %23 : vector<8x16x128xf32>
    %cst_11 = arith.constant dense<0.000000e+00> : vector<8x128xf32>
    %25 = vector.multi_reduction <add>, %24, %cst_11 [1] : vector<8x16x128xf32> to vector<8x128xf32>
    %c0_12 = arith.constant 0 : index
    %c0_13 = arith.constant 0 : index
    %26 = vector.load %arg4[%c0_12, %c0_13] : memref<8x1xf32, #tpu.memory_space<vmem>>, vector<8x1xf32>
    %27 = vector.broadcast %26 : vector<8x1xf32> to vector<8x128xf32>
    %28 = arith.mulf %25, %27 : vector<8x128xf32>
    %29 = tpu.concatenate %14, %28 in 0 : vector<8x128xf32>, vector<8x128xf32> -> vector<16x128xf32>
    %c0_14 = arith.constant 0 : index
    %c0_15 = arith.constant 0 : index
    %30 = vector.load %arg7[%c0_14, %c0_15] : memref<128x128xbf16, #tpu.memory_space<vmem>>, vector<128x128xbf16>
    %31 = arith.truncf %29 : vector<16x128xf32> to vector<16x128xbf16>
    %cst_16 = arith.constant dense<0.000000e+00> : vector<16x128xf32>
    %32 = tpu.matmul %31, %30, %cst_16 {dimension_numbers = #tpu.dot_dimension_numbers<[1], [0], [0], [1], [0, 0, 1, 1], [], []>} : vector<16x128xbf16>, vector<128x128xbf16>, vector<16x128xf32> -> vector<16x128xf32>
    %c0_17 = arith.constant 0 : index
    %c0_18 = arith.constant 0 : index
    %33 = vector.load %arg8[%c0_17, %c0_18] : memref<1x128xf32, #tpu.memory_space<vmem>>, vector<1x128xf32>
    %34 = vector.broadcast %33 : vector<1x128xf32> to vector<16x128xf32>
    %35 = arith.addf %32, %34 : vector<16x128xf32>
    %36 = vector.extract_strided_slice %35 {offsets = [0, 0], sizes = [8, 128], strides = [1, 1]} : vector<16x128xf32> to vector<8x128xf32>
    %37 = vector.extract_strided_slice %35 {offsets = [8, 0], sizes = [8, 128], strides = [1, 1]} : vector<16x128xf32> to vector<8x128xf32>
    %38 = arith.subf %36, %37 : vector<8x128xf32>
    %39 = arith.mulf %36, %37 : vector<8x128xf32>
    %c0_19 = arith.constant 0 : index
    %c0_20 = arith.constant 0 : index
    %40 = vector.load %arg9[%c0_19, %c0_20] : memref<512x64xbf16, #tpu.memory_space<vmem>>, vector<512x64xbf16>
    %41 = vector.extract_strided_slice %40 {offsets = [0, 0], sizes = [128, 64], strides = [1, 1]} : vector<512x64xbf16> to vector<128x64xbf16>
    %42 = arith.truncf %36 : vector<8x128xf32> to vector<8x128xbf16>
    %cst_21 = arith.constant dense<0.000000e+00> : vector<8x64xf32>
    %43 = tpu.matmul %42, %41, %cst_21 {dimension_numbers = #tpu.dot_dimension_numbers<[1], [0], [0], [1], [0, 0, 1, 1], [], []>} : vector<8x128xbf16>, vector<128x64xbf16>, vector<8x64xf32> -> vector<8x64xf32>
    %44 = vector.extract_strided_slice %40 {offsets = [128, 0], sizes = [128, 64], strides = [1, 1]} : vector<512x64xbf16> to vector<128x64xbf16>
    %45 = arith.truncf %37 : vector<8x128xf32> to vector<8x128xbf16>
    %cst_22 = arith.constant dense<0.000000e+00> : vector<8x64xf32>
    %46 = tpu.matmul %45, %44, %cst_22 {dimension_numbers = #tpu.dot_dimension_numbers<[1], [0], [0], [1], [0, 0, 1, 1], [], []>} : vector<8x128xbf16>, vector<128x64xbf16>, vector<8x64xf32> -> vector<8x64xf32>
    %47 = arith.addf %43, %46 : vector<8x64xf32>
    %48 = vector.extract_strided_slice %40 {offsets = [256, 0], sizes = [128, 64], strides = [1, 1]} : vector<512x64xbf16> to vector<128x64xbf16>
    %49 = arith.truncf %38 : vector<8x128xf32> to vector<8x128xbf16>
    %cst_23 = arith.constant dense<0.000000e+00> : vector<8x64xf32>
    %50 = tpu.matmul %49, %48, %cst_23 {dimension_numbers = #tpu.dot_dimension_numbers<[1], [0], [0], [1], [0, 0, 1, 1], [], []>} : vector<8x128xbf16>, vector<128x64xbf16>, vector<8x64xf32> -> vector<8x64xf32>
    %51 = arith.addf %47, %50 : vector<8x64xf32>
    %52 = vector.extract_strided_slice %40 {offsets = [384, 0], sizes = [128, 64], strides = [1, 1]} : vector<512x64xbf16> to vector<128x64xbf16>
    %53 = arith.truncf %39 : vector<8x128xf32> to vector<8x128xbf16>
    %cst_24 = arith.constant dense<0.000000e+00> : vector<8x64xf32>
    %54 = tpu.matmul %53, %52, %cst_24 {dimension_numbers = #tpu.dot_dimension_numbers<[1], [0], [0], [1], [0, 0, 1, 1], [], []>} : vector<8x128xbf16>, vector<128x64xbf16>, vector<8x64xf32> -> vector<8x64xf32>
    %55 = arith.addf %51, %54 : vector<8x64xf32>
    %c0_25 = arith.constant 0 : index
    %c0_26 = arith.constant 0 : index
    %56 = vector.load %arg10[%c0_25, %c0_26] : memref<1x64xf32, #tpu.memory_space<vmem>>, vector<1x64xf32>
    %57 = vector.broadcast %56 : vector<1x64xf32> to vector<8x64xf32>
    %58 = arith.addf %55, %57 : vector<8x64xf32>
    %cst_27 = arith.constant 0.000000e+00 : f32
    %59 = vector.broadcast %cst_27 : f32 to vector<8x64xf32>
    %60 = arith.maximumf %58, %59 : vector<8x64xf32>
    %c0_28 = arith.constant 0 : index
    %c0_29 = arith.constant 0 : index
    %61 = vector.load %arg11[%c0_28, %c0_29] : memref<576x64xbf16, #tpu.memory_space<vmem>>, vector<576x64xbf16>
    %62 = vector.extract_strided_slice %61 {offsets = [0, 0], sizes = [128, 64], strides = [1, 1]} : vector<576x64xbf16> to vector<128x64xbf16>
    %63 = arith.truncf %36 : vector<8x128xf32> to vector<8x128xbf16>
    %cst_30 = arith.constant dense<0.000000e+00> : vector<8x64xf32>
    %64 = tpu.matmul %63, %62, %cst_30 {dimension_numbers = #tpu.dot_dimension_numbers<[1], [0], [0], [1], [0, 0, 1, 1], [], []>} : vector<8x128xbf16>, vector<128x64xbf16>, vector<8x64xf32> -> vector<8x64xf32>
    %65 = vector.extract_strided_slice %61 {offsets = [128, 0], sizes = [128, 64], strides = [1, 1]} : vector<576x64xbf16> to vector<128x64xbf16>
    %66 = arith.truncf %37 : vector<8x128xf32> to vector<8x128xbf16>
    %cst_31 = arith.constant dense<0.000000e+00> : vector<8x64xf32>
    %67 = tpu.matmul %66, %65, %cst_31 {dimension_numbers = #tpu.dot_dimension_numbers<[1], [0], [0], [1], [0, 0, 1, 1], [], []>} : vector<8x128xbf16>, vector<128x64xbf16>, vector<8x64xf32> -> vector<8x64xf32>
    %68 = arith.addf %64, %67 : vector<8x64xf32>
    %69 = vector.extract_strided_slice %61 {offsets = [256, 0], sizes = [128, 64], strides = [1, 1]} : vector<576x64xbf16> to vector<128x64xbf16>
    %70 = arith.truncf %38 : vector<8x128xf32> to vector<8x128xbf16>
    %cst_32 = arith.constant dense<0.000000e+00> : vector<8x64xf32>
    %71 = tpu.matmul %70, %69, %cst_32 {dimension_numbers = #tpu.dot_dimension_numbers<[1], [0], [0], [1], [0, 0, 1, 1], [], []>} : vector<8x128xbf16>, vector<128x64xbf16>, vector<8x64xf32> -> vector<8x64xf32>
    %72 = arith.addf %68, %71 : vector<8x64xf32>
    %73 = vector.extract_strided_slice %61 {offsets = [384, 0], sizes = [128, 64], strides = [1, 1]} : vector<576x64xbf16> to vector<128x64xbf16>
    %74 = arith.truncf %39 : vector<8x128xf32> to vector<8x128xbf16>
    %cst_33 = arith.constant dense<0.000000e+00> : vector<8x64xf32>
    %75 = tpu.matmul %74, %73, %cst_33 {dimension_numbers = #tpu.dot_dimension_numbers<[1], [0], [0], [1], [0, 0, 1, 1], [], []>} : vector<8x128xbf16>, vector<128x64xbf16>, vector<8x64xf32> -> vector<8x64xf32>
    %76 = arith.addf %72, %75 : vector<8x64xf32>
    %77 = vector.extract_strided_slice %61 {offsets = [512, 0], sizes = [64, 64], strides = [1, 1]} : vector<576x64xbf16> to vector<64x64xbf16>
    %78 = arith.truncf %60 : vector<8x64xf32> to vector<8x64xbf16>
    %cst_34 = arith.constant dense<0.000000e+00> : vector<8x64xf32>
    %79 = tpu.matmul %78, %77, %cst_34 {dimension_numbers = #tpu.dot_dimension_numbers<[1], [0], [0], [1], [0, 0, 1, 1], [], []>} : vector<8x64xbf16>, vector<64x64xbf16>, vector<8x64xf32> -> vector<8x64xf32>
    %80 = arith.addf %76, %79 : vector<8x64xf32>
    %c0_35 = arith.constant 0 : index
    %c0_36 = arith.constant 0 : index
    %81 = vector.load %arg12[%c0_35, %c0_36] : memref<1x64xf32, #tpu.memory_space<vmem>>, vector<1x64xf32>
    %82 = vector.broadcast %81 : vector<1x64xf32> to vector<8x64xf32>
    %83 = arith.addf %80, %82 : vector<8x64xf32>
    %cst_37 = arith.constant 0.000000e+00 : f32
    %84 = vector.broadcast %cst_37 : f32 to vector<8x64xf32>
    %85 = arith.maximumf %83, %84 : vector<8x64xf32>
    %c0_38 = arith.constant 0 : index
    %c0_39 = arith.constant 0 : index
    %86 = vector.load %arg13[%c0_38, %c0_39] : memref<64x128xbf16, #tpu.memory_space<vmem>>, vector<64x128xbf16>
    %87 = arith.truncf %85 : vector<8x64xf32> to vector<8x64xbf16>
    %cst_40 = arith.constant dense<0.000000e+00> : vector<8x128xf32>
    %88 = tpu.matmul %87, %86, %cst_40 {dimension_numbers = #tpu.dot_dimension_numbers<[1], [0], [0], [1], [0, 0, 1, 1], [], []>} : vector<8x64xbf16>, vector<64x128xbf16>, vector<8x128xf32> -> vector<8x128xf32>
    %c0_41 = arith.constant 0 : index
    %c0_42 = arith.constant 0 : index
    %89 = vector.load %arg14[%c0_41, %c0_42] : memref<1x128xf32, #tpu.memory_space<vmem>>, vector<1x128xf32>
    %90 = vector.broadcast %89 : vector<1x128xf32> to vector<8x128xf32>
    %91 = arith.addf %88, %90 : vector<8x128xf32>
    %c0_43 = arith.constant 0 : index
    %c0_44 = arith.constant 0 : index
    %92 = vector.load %arg15[%c0_43, %c0_44] : memref<8x128xf32, #tpu.memory_space<vmem>>, vector<8x128xf32>
    tpu.vector_store %arg15[%c0_43, %c0_44], %91 {strides = array<i32>} : memref<8x128xf32, #tpu.memory_space<vmem>>, vector<8x128xf32>,
    return
  }
  func.func @transform_0(%arg0: i32) -> (i32, i32) {
    %c0_i32 = arith.constant 0 : i32
    %c0_i32_0 = arith.constant 0 : i32
    return %arg0, %c0_i32 : i32, i32
  }
  func.func @transform_1(%arg0: i32) -> (i32, i32) {
    %c0_i32 = arith.constant 0 : i32
    %c0_i32_0 = arith.constant 0 : i32
    return %arg0, %c0_i32 : i32, i32
  }
  func.func @transform_2(%arg0: i32) -> (i32, i32) {
    %c0_i32 = arith.constant 0 : i32
    %c0_i32_0 = arith.constant 0 : i32
    return %arg0, %c0_i32 : i32, i32
  }
  func.func @transform_3(%arg0: i32) -> (i32, i32) {
    %c0_i32 = arith.constant 0 : i32
    %c0_i32_0 = arith.constant 0 : i32
    return %arg0, %c0_i32 : i32, i32
  }
  func.func @transform_4(%arg0: i32) -> (i32, i32, i32) {
    %c0_i32 = arith.constant 0 : i32
    %c0_i32_0 = arith.constant 0 : i32
    %c0_i32_1 = arith.constant 0 : i32
    return %arg0, %c0_i32, %c0_i32_0 : i32, i32, i32
  }
  func.func @transform_5(%arg0: i32) -> (i32, i32, i32) {
    %c0_i32 = arith.constant 0 : i32
    %c0_i32_0 = arith.constant 0 : i32
    %c0_i32_1 = arith.constant 0 : i32
    return %arg0, %c0_i32, %c0_i32_0 : i32, i32, i32
  }
  func.func @transform_6(%arg0: i32) -> (i32, i32) {
    %c0_i32 = arith.constant 0 : i32
    %c0_i32_0 = arith.constant 0 : i32
    %c0_i32_1 = arith.constant 0 : i32
    return %c0_i32, %c0_i32_0 : i32, i32
  }
  func.func @transform_7(%arg0: i32) -> (i32, i32) {
    %c0_i32 = arith.constant 0 : i32
    %c0_i32_0 = arith.constant 0 : i32
    %c0_i32_1 = arith.constant 0 : i32
    return %c0_i32, %c0_i32_0 : i32, i32
  }
  func.func @transform_8(%arg0: i32) -> (i32, i32) {
    %c0_i32 = arith.constant 0 : i32
    %c0_i32_0 = arith.constant 0 : i32
    %c0_i32_1 = arith.constant 0 : i32
    return %c0_i32, %c0_i32_0 : i32, i32
  }
  func.func @transform_9(%arg0: i32) -> (i32, i32) {
    %c0_i32 = arith.constant 0 : i32
    %c0_i32_0 = arith.constant 0 : i32
    %c0_i32_1 = arith.constant 0 : i32
    return %c0_i32, %c0_i32_0 : i32, i32
  }
  func.func @transform_10(%arg0: i32) -> (i32, i32) {
    %c0_i32 = arith.constant 0 : i32
    %c0_i32_0 = arith.constant 0 : i32
    %c0_i32_1 = arith.constant 0 : i32
    return %c0_i32, %c0_i32_0 : i32, i32
  }
  func.func @transform_11(%arg0: i32) -> (i32, i32) {
    %c0_i32 = arith.constant 0 : i32
    %c0_i32_0 = arith.constant 0 : i32
    %c0_i32_1 = arith.constant 0 : i32
    return %c0_i32, %c0_i32_0 : i32, i32
  }
  func.func @transform_12(%arg0: i32) -> (i32, i32) {
    %c0_i32 = arith.constant 0 : i32
    %c0_i32_0 = arith.constant 0 : i32
    %c0_i32_1 = arith.constant 0 : i32
    return %c0_i32, %c0_i32_0 : i32, i32
  }
  func.func @transform_13(%arg0: i32) -> (i32, i32) {
    %c0_i32 = arith.constant 0 : i32
    %c0_i32_0 = arith.constant 0 : i32
    %c0_i32_1 = arith.constant 0 : i32
    return %c0_i32, %c0_i32_0 : i32, i32
  }
  func.func @transform_14(%arg0: i32) -> (i32, i32) {
    %c0_i32 = arith.constant 0 : i32
    %c0_i32_0 = arith.constant 0 : i32
    return %arg0, %c0_i32 : i32, i32
  }
}

</mosaic_0001>

<llo_original>
// kernel: nn4emo_forward.1
$region0: #{nn4emo_forward.1}
  #allocation0 [shape = 'u32[]', space=smem, size = 0x4, offset = 0x4, fixed_abs, tag = 'smem constant byte address 0x4 - core index']
  #allocation1 [shape = 'u32[144,128]{1,0:T(1,128)}', space=vmem, size = 0x12000, scoped, tag = 'internal scratch']
  %s0 = inlined_call_operand.vmem [shape: s32[8,1], index: 0, kind: input, shape index: {}]
  %s1 = inlined_call_operand.vmem [shape: f32[8,1], index: 1, kind: input, shape index: {}]
  %s2 = inlined_call_operand.vmem [shape: s32[8,1], index: 2, kind: input, shape index: {}]
  %s3 = inlined_call_operand.vmem [shape: f32[8,1], index: 3, kind: input, shape index: {}]
  %s4 = inlined_call_operand.vmem [shape: bf16[8,16,128], index: 4, kind: input, shape index: {}]
  %s5 = inlined_call_operand.vmem [shape: bf16[8,16,128], index: 5, kind: input, shape index: {}]
  %s6 = inlined_call_operand.vmem [shape: bf16[128,128], index: 6, kind: input, shape index: {}]
  %s7 = inlined_call_operand.vmem [shape: f32[1,128], index: 7, kind: input, shape index: {}]
  %s8 = inlined_call_operand.vmem [shape: bf16[512,64], index: 8, kind: input, shape index: {}]
  %s9 = inlined_call_operand.vmem [shape: f32[1,64], index: 9, kind: input, shape index: {}]
  %s10 = inlined_call_operand.vmem [shape: bf16[576,64], index: 10, kind: input, shape index: {}]
  %s11 = inlined_call_operand.vmem [shape: f32[1,64], index: 11, kind: input, shape index: {}]
  %s12 = inlined_call_operand.vmem [shape: bf16[64,128], index: 12, kind: input, shape index: {}]
  %s13 = inlined_call_operand.vmem [shape: f32[1,128], index: 13, kind: input, shape index: {}]
  %s14 = inlined_call_operand.vmem [shape: f32[8,128], index: 14, kind: output, shape index: {}]
  %s15 = sld [smem:[#allocation0]]
  $region66: #{nn4emo_forward.1} parent=0
    _
  %s17 = ssub.s32 1, %s15
  %s18 = scalar_select 0, %s17, %s15
  // Predicated region
  $region2: #{nn4emo_forward.1} parent=0 // pred_check
    _
  $region3: #{nn4emo_forward.1} parent=0 // pred_check_branch
    %20 = sbr.rel (0) target = $region5
  $region4: #{nn4emo_forward.1} parent=0 // pred_region
    _
  $region5: #{nn4emo_forward.1} parent=0 // pred_fallthru
    _
  // Predicated region
  $region6: #{nn4emo_forward.1} parent=0 // pred_check
    _
  $region7: #{nn4emo_forward.1} parent=0 // pred_check_branch
    %22 = sbr.rel (0) target = $region9
  $region8: #{nn4emo_forward.1} parent=0 // pred_region
    _
  $region9: #{nn4emo_forward.1} parent=0 // pred_fallthru
    _
  // Predicated region
  $region10: #{nn4emo_forward.1} parent=0 // pred_check
    _
  $region11: #{nn4emo_forward.1} parent=0 // pred_check_branch
    %24 = sbr.rel (0) target = $region13
  $region12: #{nn4emo_forward.1} parent=0 // pred_region
    _
  $region13: #{nn4emo_forward.1} parent=0 // pred_fallthru
    _
  // Predicated region
  $region14: #{nn4emo_forward.1} parent=0 // pred_check
    _
  $region15: #{nn4emo_forward.1} parent=0 // pred_check_branch
    %26 = sbr.rel (0) target = $region17
  $region16: #{nn4emo_forward.1} parent=0 // pred_region
    _
  $region17: #{nn4emo_forward.1} parent=0 // pred_fallthru
    _
  // Predicated region
  $region18: #{nn4emo_forward.1} parent=0 // pred_check
    _
  $region19: #{nn4emo_forward.1} parent=0 // pred_check_branch
    %28 = sbr.rel (0) target = $region21
  $region20: #{nn4emo_forward.1} parent=0 // pred_region
    _
  $region21: #{nn4emo_forward.1} parent=0 // pred_fallthru
    _
  // Predicated region
  $region22: #{nn4emo_forward.1} parent=0 // pred_check
    _
  $region23: #{nn4emo_forward.1} parent=0 // pred_check_branch
    %30 = sbr.rel (0) target = $region25
  $region24: #{nn4emo_forward.1} parent=0 // pred_region
    _
  $region25: #{nn4emo_forward.1} parent=0 // pred_fallthru
    _
  // Predicated region
  $region26: #{nn4emo_forward.1} parent=0 // pred_check
    _
  $region27: #{nn4emo_forward.1} parent=0 // pred_check_branch
    %32 = sbr.rel (0) target = $region29
  $region28: #{nn4emo_forward.1} parent=0 // pred_region
    _
  $region29: #{nn4emo_forward.1} parent=0 // pred_fallthru
    _
  // Predicated region
  $region30: #{nn4emo_forward.1} parent=0 // pred_check
    _
  $region31: #{nn4emo_forward.1} parent=0 // pred_check_branch
    %34 = sbr.rel (0) target = $region33
  $region32: #{nn4emo_forward.1} parent=0 // pred_region
    _
  $region33: #{nn4emo_forward.1} parent=0 // pred_fallthru
    _
  // Predicated region
  $region34: #{nn4emo_forward.1} parent=0 // pred_check
    _
  $region35: #{nn4emo_forward.1} parent=0 // pred_check_branch
    %36 = sbr.rel (0) target = $region37
  $region36: #{nn4emo_forward.1} parent=0 // pred_region
    _
  $region37: #{nn4emo_forward.1} parent=0 // pred_fallthru
    _
  // Predicated region
  $region38: #{nn4emo_forward.1} parent=0 // pred_check
    _
  $region39: #{nn4emo_forward.1} parent=0 // pred_check_branch
    %38 = sbr.rel (0) target = $region41
  $region40: #{nn4emo_forward.1} parent=0 // pred_region
    _
  $region41: #{nn4emo_forward.1} parent=0 // pred_fallthru
    _
  // Predicated region
  $region42: #{nn4emo_forward.1} parent=0 // pred_check
    _
  $region43: #{nn4emo_forward.1} parent=0 // pred_check_branch
    %40 = sbr.rel (0) target = $region45
  $region44: #{nn4emo_forward.1} parent=0 // pred_region
    _
  $region45: #{nn4emo_forward.1} parent=0 // pred_fallthru
    _
  // Predicated region
  $region46: #{nn4emo_forward.1} parent=0 // pred_check
    _
  $region47: #{nn4emo_forward.1} parent=0 // pred_check_branch
    %42 = sbr.rel (0) target = $region49
  $region48: #{nn4emo_forward.1} parent=0 // pred_region
    _
  $region49: #{nn4emo_forward.1} parent=0 // pred_fallthru
    _
  // Predicated region
  $region50: #{nn4emo_forward.1} parent=0 // pred_check
    _
  $region51: #{nn4emo_forward.1} parent=0 // pred_check_branch
    %44 = sbr.rel (0) target = $region53
  $region52: #{nn4emo_forward.1} parent=0 // pred_region
    _
  $region53: #{nn4emo_forward.1} parent=0 // pred_fallthru
    _
  // Predicated region
  $region54: #{nn4emo_forward.1} parent=0 // pred_check
    _
  $region55: #{nn4emo_forward.1} parent=0 // pred_check_branch
    %46 = sbr.rel (0) target = $region57
  $region56: #{nn4emo_forward.1} parent=0 // pred_region
    _
  $region57: #{nn4emo_forward.1} parent=0 // pred_fallthru
    _
  %v48 = vlaneseq
  %v49 = vand.u32 %v48, 127
  %v50 = vld [vmem:[%s0] sm:$0xff]
  %51 = vset.pattern.permute.xlu0 0
  %52 = vperm.xlu0 %51, %v50
  %v53 = vpop.permute.xlu0 %52
  %vm54 = vcmp.lt.s32.totalorder %v49, %v53
  %v55 = vsel %vm54, 1, 0
  %v56 = vcvt.s32.f32 %v55
  %v57 = vld [vmem:[%s4] sm:$0xf]
  %v58 = vld [vmem:[%s4 + $0x4] sm:$0xf]
  %v59 = vld [vmem:[%s4 + $0x8] sm:$0xf]
  %v60 = vld [vmem:[%s4 + $0xc] sm:$0xf]
  %v61 = vld [vmem:[%s4 + $0x10] sm:$0xf]
  %v62 = vld [vmem:[%s4 + $0x14] sm:$0xf]
  %v63 = vld [vmem:[%s4 + $0x18] sm:$0xf]
  %v64 = vld [vmem:[%s4 + $0x1c] sm:$0xf]
  %v65 = vld [vmem:[%s4 + $0x20] sm:$0xf]
  %v66 = vld [vmem:[%s4 + $0x24] sm:$0xf]
  %v67 = vld [vmem:[%s4 + $0x28] sm:$0xf]
  %v68 = vld [vmem:[%s4 + $0x2c] sm:$0xf]
  %v69 = vld [vmem:[%s4 + $0x30] sm:$0xf]
  %v70 = vld [vmem:[%s4 + $0x34] sm:$0xf]
  %v71 = vld [vmem:[%s4 + $0x38] sm:$0xf]
  %v72 = vld [vmem:[%s4 + $0x3c] sm:$0xf]
  %v73 = vunpack.c.l.bf16 %v57
  %v74 = vunpack.c.l.bf16 %v58
  %v75 = vunpack.c.l.bf16 %v59
  %v76 = vunpack.c.l.bf16 %v60
  %v77 = vunpack.c.l.bf16 %v61
  %v78 = vunpack.c.l.bf16 %v62
  %v79 = vunpack.c.l.bf16 %v63
  %v80 = vunpack.c.l.bf16 %v64
  %v81 = vunpack.c.l.bf16 %v65
  %v82 = vunpack.c.l.bf16 %v66
  %v83 = vunpack.c.l.bf16 %v67
  %v84 = vunpack.c.l.bf16 %v68
  %v85 = vunpack.c.l.bf16 %v69
  %v86 = vunpack.c.l.bf16 %v70
  %v87 = vunpack.c.l.bf16 %v71
  %v88 = vunpack.c.l.bf16 %v72
  %v89 = vlaneseq
  %v90 = vshrl.u32 %v89, 7
  %v91 = vsub.s32 0, %v90
  %v92 = vrot.slane %v56, %v91
  %94 = vbcast.lane.b32.xlu0 %v92, 256
  %v95 = vpop.permute.xlu0 %94
  %s97 = sor.u32 256, 8
  %98 = vbcast.lane.b32.xlu0 %v92, %s97
  %v99 = vpop.permute.xlu0 %98
  %v100 = vlaneseq
  %v101 = vshrl.u32 %v100, 7
  %v102 = vsub.s32 1, %v101
  %v103 = vrot.slane %v56, %v102
  %105 = vbcast.lane.b32.xlu0 %v103, 256
  %v106 = vpop.permute.xlu0 %105
  %s108 = sor.u32 256, 8
  %109 = vbcast.lane.b32.xlu0 %v103, %s108
  %v110 = vpop.permute.xlu0 %109
  %v111 = vlaneseq
  %v112 = vshrl.u32 %v111, 7
  %v113 = vsub.s32 2, %v112
  %v114 = vrot.slane %v56, %v113
  %116 = vbcast.lane.b32.xlu0 %v114, 256
  %v117 = vpop.permute.xlu0 %116
  %s119 = sor.u32 256, 8
  %120 = vbcast.lane.b32.xlu0 %v114, %s119
  %v121 = vpop.permute.xlu0 %120
  %v122 = vlaneseq
  %v123 = vshrl.u32 %v122, 7
  %v124 = vsub.s32 3, %v123
  %v125 = vrot.slane %v56, %v124
  %127 = vbcast.lane.b32.xlu0 %v125, 256
  %v128 = vpop.permute.xlu0 %127
  %s130 = sor.u32 256, 8
  %131 = vbcast.lane.b32.xlu0 %v125, %s130
  %v132 = vpop.permute.xlu0 %131
  %v133 = vlaneseq
  %v134 = vshrl.u32 %v133, 7
  %v135 = vsub.s32 4, %v134
  %v136 = vrot.slane %v56, %v135
  %138 = vbcast.lane.b32.xlu0 %v136, 256
  %v139 = vpop.permute.xlu0 %138
  %s141 = sor.u32 256, 8
  %142 = vbcast.lane.b32.xlu0 %v136, %s141
  %v143 = vpop.permute.xlu0 %142
  %v144 = vlaneseq
  %v145 = vshrl.u32 %v144, 7
  %v146 = vsub.s32 5, %v145
  %v147 = vrot.slane %v56, %v146
  %149 = vbcast.lane.b32.xlu0 %v147, 256
  %v150 = vpop.permute.xlu0 %149
  %s152 = sor.u32 256, 8
  %153 = vbcast.lane.b32.xlu0 %v147, %s152
  %v154 = vpop.permute.xlu0 %153
  %v155 = vlaneseq
  %v156 = vshrl.u32 %v155, 7
  %v157 = vsub.s32 6, %v156
  %v158 = vrot.slane %v56, %v157
  %160 = vbcast.lane.b32.xlu0 %v158, 256
  %v161 = vpop.permute.xlu0 %160
  %s163 = sor.u32 256, 8
  %164 = vbcast.lane.b32.xlu0 %v158, %s163
  %v165 = vpop.permute.xlu0 %164
  %v166 = vlaneseq
  %v167 = vshrl.u32 %v166, 7
  %v168 = vsub.s32 7, %v167
  %v169 = vrot.slane %v56, %v168
  %171 = vbcast.lane.b32.xlu0 %v169, 256
  %v172 = vpop.permute.xlu0 %171
  %s174 = sor.u32 256, 8
  %175 = vbcast.lane.b32.xlu0 %v169, %s174
  %v176 = vpop.permute.xlu0 %175
  %v177 = vmul.f32 %v73, %v95
  %v178 = vmul.f32 %v74, %v99
  %v179 = vmul.f32 %v75, %v106
  %v180 = vmul.f32 %v76, %v110
  %v181 = vmul.f32 %v77, %v117
  %v182 = vmul.f32 %v78, %v121
  %v183 = vmul.f32 %v79, %v128
  %v184 = vmul.f32 %v80, %v132
  %v185 = vmul.f32 %v81, %v139
  %v186 = vmul.f32 %v82, %v143
  %v187 = vmul.f32 %v83, %v150
  %v188 = vmul.f32 %v84, %v154
  %v189 = vmul.f32 %v85, %v161
  %v190 = vmul.f32 %v86, %v165
  %v191 = vmul.f32 %v87, %v172
  %v192 = vmul.f32 %v88, %v176
  %v193 = vadd.f32 %v177, %v178
  %v194 = vrot.slane %v193, 4
  %v195 = vadd.f32 %v193, %v194
  %v196 = vrot.slane %v195, 2
  %v197 = vadd.f32 %v195, %v196
  %v198 = vrot.slane %v197, 1
  %v199 = vadd.f32 %v197, %v198
  %v200 = vadd.f32 %v179, %v180
  %v201 = vrot.slane %v200, 4
  %v202 = vadd.f32 %v200, %v201
  %v203 = vrot.slane %v202, 2
  %v204 = vadd.f32 %v202, %v203
  %v205 = vrot.slane %v204, 1
  %v206 = vadd.f32 %v204, %v205
  %v207 = vadd.f32 %v181, %v182
  %v208 = vrot.slane %v207, 4
  %v209 = vadd.f32 %v207, %v208
  %v210 = vrot.slane %v209, 2
  %v211 = vadd.f32 %v209, %v210
  %v212 = vrot.slane %v211, 1
  %v213 = vadd.f32 %v211, %v212
  %v214 = vadd.f32 %v183, %v184
  %v215 = vrot.slane %v214, 4
  %v216 = vadd.f32 %v214, %v215
  %v217 = vrot.slane %v216, 2
  %v218 = vadd.f32 %v216, %v217
  %v219 = vrot.slane %v218, 1
  %v220 = vadd.f32 %v218, %v219
  %v221 = vadd.f32 %v185, %v186
  %v222 = vrot.slane %v221, 4
  %v223 = vadd.f32 %v221, %v222
  %v224 = vrot.slane %v223, 2
  %v225 = vadd.f32 %v223, %v224
  %v226 = vrot.slane %v225, 1
  %v227 = vadd.f32 %v225, %v226
  %v228 = vadd.f32 %v187, %v188
  %v229 = vrot.slane %v228, 4
  %v230 = vadd.f32 %v228, %v229
  %v231 = vrot.slane %v230, 2
  %v232 = vadd.f32 %v230, %v231
  %v233 = vrot.slane %v232, 1
  %v234 = vadd.f32 %v232, %v233
  %v235 = vadd.f32 %v189, %v190
  %v236 = vrot.slane %v235, 4
  %v237 = vadd.f32 %v235, %v236
  %v238 = vrot.slane %v237, 2
  %v239 = vadd.f32 %v237, %v238
  %v240 = vrot.slane %v239, 1
  %v241 = vadd.f32 %v239, %v240
  %v242 = vadd.f32 %v191, %v192
  %v243 = vrot.slane %v242, 4
  %v244 = vadd.f32 %v242, %v243
  %v245 = vrot.slane %v244, 2
  %v246 = vadd.f32 %v244, %v245
  %v247 = vrot.slane %v246, 1
  %v248 = vadd.f32 %v246, %v247
  %v249 = vld [vmem:[%s1] sm:$0xff]
  %251 = vset.pattern.permute.xlu0 0
  %252 = vperm.xlu0 %251, %v249
  %v253 = vpop.permute.xlu0 %252
  %v254 = vrot.slane %v253, 1
  %v255 = vrot.slane %v253, 2
  %v256 = vrot.slane %v253, 3
  %v257 = vrot.slane %v253, 4
  %v258 = vrot.slane %v253, 5
  %v259 = vrot.slane %v253, 6
  %v260 = vrot.slane %v253, 7
  %v269 = vmul.f32 %v199, %v253
  %v270 = vmul.f32 %v206, %v254
  %v271 = vmul.f32 %v213, %v255
  %v272 = vmul.f32 %v220, %v256
  %v273 = vmul.f32 %v227, %v257
  %v274 = vmul.f32 %v234, %v258
  %v275 = vmul.f32 %v241, %v259
  %v276 = vmul.f32 %v248, %v260
  %v277 = vld [vmem:[%s2] sm:$0xff]
  %278 = vset.pattern.permute.xlu0 0
  %279 = vperm.xlu0 %278, %v277
  %v280 = vpop.permute.xlu0 %279
  %vm281 = vcmp.lt.s32.totalorder %v49, %v280
  %v282 = vsel %vm281, 1, 0
  %v283 = vcvt.s32.f32 %v282
  %v284 = vld [vmem:[%s5] sm:$0xf]
  %v285 = vld [vmem:[%s5 + $0x4] sm:$0xf]
  %v286 = vld [vmem:[%s5 + $0x8] sm:$0xf]
  %v287 = vld [vmem:[%s5 + $0xc] sm:$0xf]
  %v288 = vld [vmem:[%s5 + $0x10] sm:$0xf]
  %v289 = vld [vmem:[%s5 + $0x14] sm:$0xf]
  %v290 = vld [vmem:[%s5 + $0x18] sm:$0xf]
  %v291 = vld [vmem:[%s5 + $0x1c] sm:$0xf]
  %v292 = vld [vmem:[%s5 + $0x20] sm:$0xf]
  %v293 = vld [vmem:[%s5 + $0x24] sm:$0xf]
  %v294 = vld [vmem:[%s5 + $0x28] sm:$0xf]
  %v295 = vld [vmem:[%s5 + $0x2c] sm:$0xf]
  %v296 = vld [vmem:[%s5 + $0x30] sm:$0xf]
  %v297 = vld [vmem:[%s5 + $0x34] sm:$0xf]
  %v298 = vld [vmem:[%s5 + $0x38] sm:$0xf]
  %v299 = vld [vmem:[%s5 + $0x3c] sm:$0xf]
  %v300 = vunpack.c.l.bf16 %v284
  %v301 = vunpack.c.l.bf16 %v285
  %v302 = vunpack.c.l.bf16 %v286
  %v303 = vunpack.c.l.bf16 %v287
  %v304 = vunpack.c.l.bf16 %v288
  %v305 = vunpack.c.l.bf16 %v289
  %v306 = vunpack.c.l.bf16 %v290
  %v307 = vunpack.c.l.bf16 %v291
  %v308 = vunpack.c.l.bf16 %v292
  %v309 = vunpack.c.l.bf16 %v293
  %v310 = vunpack.c.l.bf16 %v294
  %v311 = vunpack.c.l.bf16 %v295
  %v312 = vunpack.c.l.bf16 %v296
  %v313 = vunpack.c.l.bf16 %v297
  %v314 = vunpack.c.l.bf16 %v298
  %v315 = vunpack.c.l.bf16 %v299
  %v316 = vlaneseq
  %v317 = vshrl.u32 %v316, 7
  %v318 = vsub.s32 0, %v317
  %v319 = vrot.slane %v283, %v318
  %321 = vbcast.lane.b32.xlu0 %v319, 256
  %v322 = vpop.permute.xlu0 %321
  %s324 = sor.u32 256, 8
  %325 = vbcast.lane.b32.xlu0 %v319, %s324
  %v326 = vpop.permute.xlu0 %325
  %v327 = vlaneseq
  %v328 = vshrl.u32 %v327, 7
  %v329 = vsub.s32 1, %v328
  %v330 = vrot.slane %v283, %v329
  %332 = vbcast.lane.b32.xlu0 %v330, 256
  %v333 = vpop.permute.xlu0 %332
  %s335 = sor.u32 256, 8
  %336 = vbcast.lane.b32.xlu0 %v330, %s335
  %v337 = vpop.permute.xlu0 %336
  %v338 = vlaneseq
  %v339 = vshrl.u32 %v338, 7
  %v340 = vsub.s32 2, %v339
  %v341 = vrot.slane %v283, %v340
  %343 = vbcast.lane.b32.xlu0 %v341, 256
  %v344 = vpop.permute.xlu0 %343
  %s346 = sor.u32 256, 8
  %347 = vbcast.lane.b32.xlu0 %v341, %s346
  %v348 = vpop.permute.xlu0 %347
  %v349 = vlaneseq
  %v350 = vshrl.u32 %v349, 7
  %v351 = vsub.s32 3, %v350
  %v352 = vrot.slane %v283, %v351
  %354 = vbcast.lane.b32.xlu0 %v352, 256
  %v355 = vpop.permute.xlu0 %354
  %s357 = sor.u32 256, 8
  %358 = vbcast.lane.b32.xlu0 %v352, %s357
  %v359 = vpop.permute.xlu0 %358
  %v360 = vlaneseq
  %v361 = vshrl.u32 %v360, 7
  %v362 = vsub.s32 4, %v361
  %v363 = vrot.slane %v283, %v362
  %365 = vbcast.lane.b32.xlu0 %v363, 256
  %v366 = vpop.permute.xlu0 %365
  %s368 = sor.u32 256, 8
  %369 = vbcast.lane.b32.xlu0 %v363, %s368
  %v370 = vpop.permute.xlu0 %369
  %v371 = vlaneseq
  %v372 = vshrl.u32 %v371, 7
  %v373 = vsub.s32 5, %v372
  %v374 = vrot.slane %v283, %v373
  %376 = vbcast.lane.b32.xlu0 %v374, 256
  %v377 = vpop.permute.xlu0 %376
  %s379 = sor.u32 256, 8
  %380 = vbcast.lane.b32.xlu0 %v374, %s379
  %v381 = vpop.permute.xlu0 %380
  %v382 = vlaneseq
  %v383 = vshrl.u32 %v382, 7
  %v384 = vsub.s32 6, %v383
  %v385 = vrot.slane %v283, %v384
  %387 = vbcast.lane.b32.xlu0 %v385, 256
  %v388 = vpop.permute.xlu0 %387
  %s390 = sor.u32 256, 8
  %391 = vbcast.lane.b32.xlu0 %v385, %s390
  %v392 = vpop.permute.xlu0 %391
  %v393 = vlaneseq
  %v394 = vshrl.u32 %v393, 7
  %v395 = vsub.s32 7, %v394
  %v396 = vrot.slane %v283, %v395
  %398 = vbcast.lane.b32.xlu0 %v396, 256
  %v399 = vpop.permute.xlu0 %398
  %s401 = sor.u32 256, 8
  %402 = vbcast.lane.b32.xlu0 %v396, %s401
  %v403 = vpop.permute.xlu0 %402
  %v404 = vmul.f32 %v300, %v322
  %v405 = vmul.f32 %v301, %v326
  %v406 = vmul.f32 %v302, %v333
  %v407 = vmul.f32 %v303, %v337
  %v408 = vmul.f32 %v304, %v344
  %v409 = vmul.f32 %v305, %v348
  %v410 = vmul.f32 %v306, %v355
  %v411 = vmul.f32 %v307, %v359
  %v412 = vmul.f32 %v308, %v366
  %v413 = vmul.f32 %v309, %v370
  %v414 = vmul.f32 %v310, %v377
  %v415 = vmul.f32 %v311, %v381
  %v416 = vmul.f32 %v312, %v388
  %v417 = vmul.f32 %v313, %v392
  %v418 = vmul.f32 %v314, %v399
  %v419 = vmul.f32 %v315, %v403
  %v420 = vadd.f32 %v404, %v405
  %v421 = vrot.slane %v420, 4
  %v422 = vadd.f32 %v420, %v421
  %v423 = vrot.slane %v422, 2
  %v424 = vadd.f32 %v422, %v423
  %v425 = vrot.slane %v424, 1
  %v426 = vadd.f32 %v424, %v425
  %v427 = vadd.f32 %v406, %v407
  %v428 = vrot.slane %v427, 4
  %v429 = vadd.f32 %v427, %v428
  %v430 = vrot.slane %v429, 2
  %v431 = vadd.f32 %v429, %v430
  %v432 = vrot.slane %v431, 1
  %v433 = vadd.f32 %v431, %v432
  %v434 = vadd.f32 %v408, %v409
  %v435 = vrot.slane %v434, 4
  %v436 = vadd.f32 %v434, %v435
  %v437 = vrot.slane %v436, 2
  %v438 = vadd.f32 %v436, %v437
  %v439 = vrot.slane %v438, 1
  %v440 = vadd.f32 %v438, %v439
  %v441 = vadd.f32 %v410, %v411
  %v442 = vrot.slane %v441, 4
  %v443 = vadd.f32 %v441, %v442
  %v444 = vrot.slane %v443, 2
  %v445 = vadd.f32 %v443, %v444
  %v446 = vrot.slane %v445, 1
  %v447 = vadd.f32 %v445, %v446
  %v448 = vadd.f32 %v412, %v413
  %v449 = vrot.slane %v448, 4
  %v450 = vadd.f32 %v448, %v449
  %v451 = vrot.slane %v450, 2
  %v452 = vadd.f32 %v450, %v451
  %v453 = vrot.slane %v452, 1
  %v454 = vadd.f32 %v452, %v453
  %v455 = vadd.f32 %v414, %v415
  %v456 = vrot.slane %v455, 4
  %v457 = vadd.f32 %v455, %v456
  %v458 = vrot.slane %v457, 2
  %v459 = vadd.f32 %v457, %v458
  %v460 = vrot.slane %v459, 1
  %v461 = vadd.f32 %v459, %v460
  %v462 = vadd.f32 %v416, %v417
  %v463 = vrot.slane %v462, 4
  %v464 = vadd.f32 %v462, %v463
  %v465 = vrot.slane %v464, 2
  %v466 = vadd.f32 %v464, %v465
  %v467 = vrot.slane %v466, 1
  %v468 = vadd.f32 %v466, %v467
  %v469 = vadd.f32 %v418, %v419
  %v470 = vrot.slane %v469, 4
  %v471 = vadd.f32 %v469, %v470
  %v472 = vrot.slane %v471, 2
  %v473 = vadd.f32 %v471, %v472
  %v474 = vrot.slane %v473, 1
  %v475 = vadd.f32 %v473, %v474
  %v476 = vld [vmem:[%s3] sm:$0xff]
  %478 = vset.pattern.permute.xlu0 0
  %479 = vperm.xlu0 %478, %v476
  %v480 = vpop.permute.xlu0 %479
  %v481 = vrot.slane %v480, 1
  %v482 = vrot.slane %v480, 2
  %v483 = vrot.slane %v480, 3
  %v484 = vrot.slane %v480, 4
  %v485 = vrot.slane %v480, 5
  %v486 = vrot.slane %v480, 6
  %v487 = vrot.slane %v480, 7
  %v496 = vmul.f32 %v426, %v480
  %v497 = vmul.f32 %v433, %v481
  %v498 = vmul.f32 %v440, %v482
  %v499 = vmul.f32 %v447, %v483
  %v500 = vmul.f32 %v454, %v484
  %v501 = vmul.f32 %v461, %v485
  %v502 = vmul.f32 %v468, %v486
  %v503 = vmul.f32 %v475, %v487
  %v512 = vrot.slane %v270, 7
  %vm513 = vcmask 1041409
  %v514 = vsel %vm513, %v512, %v269
  %v515 = vrot.slane %v271, 6
  %vm516 = vcmask 1042434
  %v517 = vsel %vm516, %v515, %v514
  %v518 = vrot.slane %v272, 5
  %vm519 = vcmask 1043459
  %v520 = vsel %vm519, %v518, %v517
  %v521 = vrot.slane %v273, 4
  %vm522 = vcmask 1044484
  %v523 = vsel %vm522, %v521, %v520
  %v524 = vrot.slane %v274, 3
  %vm525 = vcmask 1045509
  %v526 = vsel %vm525, %v524, %v523
  %v527 = vrot.slane %v275, 2
  %vm528 = vcmask 1046534
  %v529 = vsel %vm528, %v527, %v526
  %v530 = vrot.slane %v276, 1
  %vm531 = vcmask 1047559
  %v532 = vsel %vm531, %v530, %v529
  %v542 = vrot.slane %v497, 7
  %v543 = vsel %vm513, %v542, %v496
  %v544 = vrot.slane %v498, 6
  %v545 = vsel %vm516, %v544, %v543
  %v546 = vrot.slane %v499, 5
  %v547 = vsel %vm519, %v546, %v545
  %v548 = vrot.slane %v500, 4
  %v549 = vsel %vm522, %v548, %v547
  %v550 = vrot.slane %v501, 3
  %v551 = vsel %vm525, %v550, %v549
  %v552 = vrot.slane %v502, 2
  %v553 = vsel %vm528, %v552, %v551
  %v554 = vrot.slane %v503, 1
  %v555 = vsel %vm531, %v554, %v553
  %v557 = vld [vmem:[%s6] sm:$0xf]
  %v558 = vld [vmem:[%s6 + $0x4] sm:$0xf]
  %v559 = vld [vmem:[%s6 + $0x8] sm:$0xf]
  %v560 = vld [vmem:[%s6 + $0xc] sm:$0xf]
  %v561 = vld [vmem:[%s6 + $0x10] sm:$0xf]
  %v562 = vld [vmem:[%s6 + $0x14] sm:$0xf]
  %v563 = vld [vmem:[%s6 + $0x18] sm:$0xf]
  %v564 = vld [vmem:[%s6 + $0x1c] sm:$0xf]
  %v565 = vld [vmem:[%s6 + $0x20] sm:$0xf]
  %v566 = vld [vmem:[%s6 + $0x24] sm:$0xf]
  %v567 = vld [vmem:[%s6 + $0x28] sm:$0xf]
  %v568 = vld [vmem:[%s6 + $0x2c] sm:$0xf]
  %v569 = vld [vmem:[%s6 + $0x30] sm:$0xf]
  %v570 = vld [vmem:[%s6 + $0x34] sm:$0xf]
  %v571 = vld [vmem:[%s6 + $0x38] sm:$0xf]
  %v572 = vld [vmem:[%s6 + $0x3c] sm:$0xf]
  %v573 = vpack.c.bf16 %v555, %v532
  %v574 = vld [vmem:[%s7] sm:$0x1]
  %v576 = vlaneseq
  %v577 = vshrl.u32 %v576, 7
  %v578 = vsub.s32 0, %v577
  %v579 = vrot.slane %v574, %v578
  %v597 = vunpack.c.l.b16 %v557
  %v598 = vunpack.c.l.b16 %v558
  %v599 = vunpack.c.l.b16 %v559
  %v600 = vunpack.c.l.b16 %v560
  %v601 = vunpack.c.l.b16 %v561
  %v602 = vunpack.c.l.b16 %v562
  %v603 = vunpack.c.l.b16 %v563
  %v604 = vunpack.c.l.b16 %v564
  %v605 = vunpack.c.l.b16 %v565
  %v606 = vunpack.c.l.b16 %v566
  %v607 = vunpack.c.l.b16 %v567
  %v608 = vunpack.c.l.b16 %v568
  %v609 = vunpack.c.l.b16 %v569
  %v610 = vunpack.c.l.b16 %v570
  %v611 = vunpack.c.l.b16 %v571
  %v612 = vunpack.c.l.b16 %v572
  %v613 = vpack.c.b16 %v598, %v597
  %v614 = vpack.c.b16 %v600, %v599
  %v615 = vpack.c.b16 %v602, %v601
  %v616 = vpack.c.b16 %v604, %v603
  %v617 = vpack.c.b16 %v606, %v605
  %v618 = vpack.c.b16 %v608, %v607
  %v619 = vpack.c.b16 %v610, %v609
  %v620 = vpack.c.b16 %v612, %v611
  %629 = vmatprep.subr.bf16.mxu0 0
  %630 = vmatpush1.bf16.msra.mxu0 %v613
  %631 = vmatprep.subr.bf16.mxu0 0
  %632 = vmatpush1.bf16.msra.mxu0 %v614
  %633 = vmatprep.subr.bf16.mxu0 0
  %634 = vmatpush1.bf16.msra.mxu0 %v615
  %635 = vmatprep.subr.bf16.mxu0 0
  %636 = vmatpush1.bf16.msra.mxu0 %v616
  %637 = vmatprep.subr.bf16.mxu0 0
  %638 = vmatpush1.bf16.msra.mxu0 %v617
  %639 = vmatprep.subr.bf16.mxu0 0
  %640 = vmatpush1.bf16.msra.mxu0 %v618
  %641 = vmatprep.subr.bf16.mxu0 0
  %642 = vmatpush1.bf16.msra.mxu0 %v619
  %643 = vmatprep.subr.bf16.mxu0 0
  %644 = vmatpush1.bf16.msra.mxu0 %v620
  %645 = vmatprep.subr.bf16.mxu0 0
  %646 = vmatpush1.bf16.msra.mxu0 0
  %647 = vmatprep.subr.bf16.mxu0 0
  %648 = vmatpush1.bf16.msra.mxu0 0
  %649 = vmatprep.subr.bf16.mxu0 0
  %650 = vmatpush1.bf16.msra.mxu0 0
  %651 = vmatprep.subr.bf16.mxu0 0
  %652 = vmatpush1.bf16.msra.mxu0 0
  %653 = vmatprep.subr.bf16.mxu0 0
  %654 = vmatpush1.bf16.msra.mxu0 0
  %655 = vmatprep.subr.bf16.mxu0 0
  %656 = vmatpush1.bf16.msra.mxu0 0
  %657 = vmatprep.subr.bf16.mxu0 0
  %658 = vmatpush1.bf16.msra.mxu0 0
  %659 = vmatprep.subr.bf16.mxu0 0
  %660 = vmatpush1.bf16.msra.mxu0 0
  %661 = vmatprep.mubr.bf16.mxu0 0
  %662 = vmatmul.mubr.bf16.gmra.mrb[0].mxu0 %v573
  %v663 = vpop.f32.mrb[0].mxu0
  %v664 = vadd.f32 %v579, %v663
  %v665 = vpop.f32.mrb[0].mxu0
  %v666 = vpop.f32.mrb[0].mxu0
  %v667 = vadd.f32 %v579, %v666
  %v668 = vpop.f32.mrb[0].mxu0
  %669 = vdwg.mxu0
  %v670 = vsub.f32 %v664, %v667
  %v671 = vmul.f32 %v664, %v667
  %v672 = vld [vmem:[%s8] sm:$0xf]
  %v673 = vld [vmem:[%s8 + $0x4] sm:$0xf]
  %v674 = vld [vmem:[%s8 + $0x8] sm:$0xf]
  %v675 = vld [vmem:[%s8 + $0xc] sm:$0xf]
  %v676 = vld [vmem:[%s8 + $0x10] sm:$0xf]
  %v677 = vld [vmem:[%s8 + $0x14] sm:$0xf]
  %v678 = vld [vmem:[%s8 + $0x18] sm:$0xf]
  %v679 = vld [vmem:[%s8 + $0x1c] sm:$0xf]
  %v680 = vld [vmem:[%s8 + $0x20] sm:$0xf]
  %v681 = vld [vmem:[%s8 + $0x24] sm:$0xf]
  %v682 = vld [vmem:[%s8 + $0x28] sm:$0xf]
  %v683 = vld [vmem:[%s8 + $0x2c] sm:$0xf]
  %v684 = vld [vmem:[%s8 + $0x30] sm:$0xf]
  %v685 = vld [vmem:[%s8 + $0x34] sm:$0xf]
  %v686 = vld [vmem:[%s8 + $0x38] sm:$0xf]
  %v687 = vld [vmem:[%s8 + $0x3c] sm:$0xf]
  %v688 = vld [vmem:[%s8 + $0x40] sm:$0xf]
  %v689 = vld [vmem:[%s8 + $0x44] sm:$0xf]
  %v690 = vld [vmem:[%s8 + $0x48] sm:$0xf]
  %v691 = vld [vmem:[%s8 + $0x4c] sm:$0xf]
  %v692 = vld [vmem:[%s8 + $0x50] sm:$0xf]
  %v693 = vld [vmem:[%s8 + $0x54] sm:$0xf]
  %v694 = vld [vmem:[%s8 + $0x58] sm:$0xf]
  %v695 = vld [vmem:[%s8 + $0x5c] sm:$0xf]
  %v696 = vld [vmem:[%s8 + $0x60] sm:$0xf]
  %v697 = vld [vmem:[%s8 + $0x64] sm:$0xf]
  %v698 = vld [vmem:[%s8 + $0x68] sm:$0xf]
  %v699 = vld [vmem:[%s8 + $0x6c] sm:$0xf]
  %v700 = vld [vmem:[%s8 + $0x70] sm:$0xf]
  %v701 = vld [vmem:[%s8 + $0x74] sm:$0xf]
  %v702 = vld [vmem:[%s8 + $0x78] sm:$0xf]
  %v703 = vld [vmem:[%s8 + $0x7c] sm:$0xf]
  %v704 = vld [vmem:[%s8 + $0x80] sm:$0xf]
  %v705 = vld [vmem:[%s8 + $0x84] sm:$0xf]
  %v706 = vld [vmem:[%s8 + $0x88] sm:$0xf]
  %v707 = vld [vmem:[%s8 + $0x8c] sm:$0xf]
  %v708 = vld [vmem:[%s8 + $0x90] sm:$0xf]
  %v709 = vld [vmem:[%s8 + $0x94] sm:$0xf]
  %v710 = vld [vmem:[%s8 + $0x98] sm:$0xf]
  %v711 = vld [vmem:[%s8 + $0x9c] sm:$0xf]
  %v712 = vld [vmem:[%s8 + $0xa0] sm:$0xf]
  %v713 = vld [vmem:[%s8 + $0xa4] sm:$0xf]
  %v714 = vld [vmem:[%s8 + $0xa8] sm:$0xf]
  %v715 = vld [vmem:[%s8 + $0xac] sm:$0xf]
  %v716 = vld [vmem:[%s8 + $0xb0] sm:$0xf]
  %v717 = vld [vmem:[%s8 + $0xb4] sm:$0xf]
  %v718 = vld [vmem:[%s8 + $0xb8] sm:$0xf]
  %v719 = vld [vmem:[%s8 + $0xbc] sm:$0xf]
  %v720 = vld [vmem:[%s8 + $0xc0] sm:$0xf]
  %v721 = vld [vmem:[%s8 + $0xc4] sm:$0xf]
  %v722 = vld [vmem:[%s8 + $0xc8] sm:$0xf]
  %v723 = vld [vmem:[%s8 + $0xcc] sm:$0xf]
  %v724 = vld [vmem:[%s8 + $0xd0] sm:$0xf]
  %v725 = vld [vmem:[%s8 + $0xd4] sm:$0xf]
  %v726 = vld [vmem:[%s8 + $0xd8] sm:$0xf]
  %v727 = vld [vmem:[%s8 + $0xdc] sm:$0xf]
  %v728 = vld [vmem:[%s8 + $0xe0] sm:$0xf]
  %v729 = vld [vmem:[%s8 + $0xe4] sm:$0xf]
  %v730 = vld [vmem:[%s8 + $0xe8] sm:$0xf]
  %v731 = vld [vmem:[%s8 + $0xec] sm:$0xf]
  %v732 = vld [vmem:[%s8 + $0xf0] sm:$0xf]
  %v733 = vld [vmem:[%s8 + $0xf4] sm:$0xf]
  %v734 = vld [vmem:[%s8 + $0xf8] sm:$0xf]
  %v735 = vld [vmem:[%s8 + $0xfc] sm:$0xf]
  %v736 = vpack.c.bf16 %v664, %v664
  %v737 = vpack.c.bf16 %v667, %v667
  %v754 = vunpack.c.l.b16 %v688
  %v755 = vunpack.c.l.b16 %v689
  %v756 = vunpack.c.l.b16 %v690
  %v757 = vunpack.c.l.b16 %v691
  %v758 = vunpack.c.l.b16 %v692
  %v759 = vunpack.c.l.b16 %v693
  %v760 = vunpack.c.l.b16 %v694
  %v761 = vunpack.c.l.b16 %v695
  %v762 = vunpack.c.l.b16 %v696
  %v763 = vunpack.c.l.b16 %v697
  %v764 = vunpack.c.l.b16 %v698
  %v765 = vunpack.c.l.b16 %v699
  %v766 = vunpack.c.l.b16 %v700
  %v767 = vunpack.c.l.b16 %v701
  %v768 = vunpack.c.l.b16 %v702
  %v769 = vunpack.c.l.b16 %v703
  %v770 = vpack.c.b16 %v755, %v754
  %v771 = vpack.c.b16 %v757, %v756
  %v772 = vpack.c.b16 %v759, %v758
  %v773 = vpack.c.b16 %v761, %v760
  %v774 = vpack.c.b16 %v763, %v762
  %v775 = vpack.c.b16 %v765, %v764
  %v776 = vpack.c.b16 %v767, %v766
  %v777 = vpack.c.b16 %v769, %v768
  %786 = vmatprep.subr.bf16.mxu0 0
  %787 = vmatpush1.bf16.msra.mxu0 %v770
  %788 = vmatprep.subr.bf16.mxu0 0
  %789 = vmatpush1.bf16.msra.mxu0 %v771
  %790 = vmatprep.subr.bf16.mxu0 0
  %791 = vmatpush1.bf16.msra.mxu0 %v772
  %792 = vmatprep.subr.bf16.mxu0 0
  %793 = vmatpush1.bf16.msra.mxu0 %v773
  %794 = vmatprep.subr.bf16.mxu0 0
  %795 = vmatpush1.bf16.msra.mxu0 %v774
  %796 = vmatprep.subr.bf16.mxu0 0
  %797 = vmatpush1.bf16.msra.mxu0 %v775
  %798 = vmatprep.subr.bf16.mxu0 0
  %799 = vmatpush1.bf16.msra.mxu0 %v776
  %800 = vmatprep.subr.bf16.mxu0 0
  %801 = vmatpush1.bf16.msra.mxu0 %v777
  %802 = vmatprep.subr.bf16.mxu0 0
  %803 = vmatpush1.bf16.msra.mxu0 0
  %804 = vmatprep.subr.bf16.mxu0 0
  %805 = vmatpush1.bf16.msra.mxu0 0
  %806 = vmatprep.subr.bf16.mxu0 0
  %807 = vmatpush1.bf16.msra.mxu0 0
  %808 = vmatprep.subr.bf16.mxu0 0
  %809 = vmatpush1.bf16.msra.mxu0 0
  %810 = vmatprep.subr.bf16.mxu0 0
  %811 = vmatpush1.bf16.msra.mxu0 0
  %812 = vmatprep.subr.bf16.mxu0 0
  %813 = vmatpush1.bf16.msra.mxu0 0
  %814 = vmatprep.subr.bf16.mxu0 0
  %815 = vmatpush1.bf16.msra.mxu0 0
  %816 = vmatprep.subr.bf16.mxu0 0
  %817 = vmatpush1.bf16.msra.mxu0 0
  %818 = vmatprep.mubr.bf16.mxu0 0
  %819 = vmatmul.mubr.bf16.gmra.mrb[0].mxu0 %v737
  %v820 = vpop.f32.mrb[0].mxu0
  %v821 = vadd.f32 0.0, %v820
  %v822 = vpop.f32.mrb[0].mxu0
  %v823 = vpop.f32.mrb[0].mxu0
  %v824 = vpop.f32.mrb[0].mxu0
  %825 = vdwg.mxu0
  %v842 = vunpack.c.l.b16 %v672
  %v843 = vunpack.c.l.b16 %v673
  %v844 = vunpack.c.l.b16 %v674
  %v845 = vunpack.c.l.b16 %v675
  %v846 = vunpack.c.l.b16 %v676
  %v847 = vunpack.c.l.b16 %v677
  %v848 = vunpack.c.l.b16 %v678
  %v849 = vunpack.c.l.b16 %v679
  %v850 = vunpack.c.l.b16 %v680
  %v851 = vunpack.c.l.b16 %v681
  %v852 = vunpack.c.l.b16 %v682
  %v853 = vunpack.c.l.b16 %v683
  %v854 = vunpack.c.l.b16 %v684
  %v855 = vunpack.c.l.b16 %v685
  %v856 = vunpack.c.l.b16 %v686
  %v857 = vunpack.c.l.b16 %v687
  %v858 = vpack.c.b16 %v843, %v842
  %v859 = vpack.c.b16 %v845, %v844
  %v860 = vpack.c.b16 %v847, %v846
  %v861 = vpack.c.b16 %v849, %v848
  %v862 = vpack.c.b16 %v851, %v850
  %v863 = vpack.c.b16 %v853, %v852
  %v864 = vpack.c.b16 %v855, %v854
  %v865 = vpack.c.b16 %v857, %v856
  %874 = vmatprep.subr.bf16.mxu0 0
  %875 = vmatpush1.bf16.msra.mxu0 %v858
  %876 = vmatprep.subr.bf16.mxu0 0
  %877 = vmatpush1.bf16.msra.mxu0 %v859
  %878 = vmatprep.subr.bf16.mxu0 0
  %879 = vmatpush1.bf16.msra.mxu0 %v860
  %880 = vmatprep.subr.bf16.mxu0 0
  %881 = vmatpush1.bf16.msra.mxu0 %v861
  %882 = vmatprep.subr.bf16.mxu0 0
  %883 = vmatpush1.bf16.msra.mxu0 %v862
  %884 = vmatprep.subr.bf16.mxu0 0
  %885 = vmatpush1.bf16.msra.mxu0 %v863
  %886 = vmatprep.subr.bf16.mxu0 0
  %887 = vmatpush1.bf16.msra.mxu0 %v864
  %888 = vmatprep.subr.bf16.mxu0 0
  %889 = vmatpush1.bf16.msra.mxu0 %v865
  %890 = vmatprep.subr.bf16.mxu0 0
  %891 = vmatpush1.bf16.msra.mxu0 0
  %892 = vmatprep.subr.bf16.mxu0 0
  %893 = vmatpush1.bf16.msra.mxu0 0
  %894 = vmatprep.subr.bf16.mxu0 0
  %895 = vmatpush1.bf16.msra.mxu0 0
  %896 = vmatprep.subr.bf16.mxu0 0
  %897 = vmatpush1.bf16.msra.mxu0 0
  %898 = vmatprep.subr.bf16.mxu0 0
  %899 = vmatpush1.bf16.msra.mxu0 0
  %900 = vmatprep.subr.bf16.mxu0 0
  %901 = vmatpush1.bf16.msra.mxu0 0
  %902 = vmatprep.subr.bf16.mxu0 0
  %903 = vmatpush1.bf16.msra.mxu0 0
  %904 = vmatprep.subr.bf16.mxu0 0
  %905 = vmatpush1.bf16.msra.mxu0 0
  %906 = vmatprep.mubr.bf16.mxu0 0
  %907 = vmatmul.mubr.bf16.gmra.mrb[0].mxu0 %v736
  %v908 = vpop.f32.mrb[0].mxu0
  %v909 = vadd.f32 %v821, %v908
  %v910 = vpop.f32.mrb[0].mxu0
  %v911 = vpop.f32.mrb[0].mxu0
  %v912 = vpop.f32.mrb[0].mxu0
  %913 = vdwg.mxu0
  %v914 = vpack.c.bf16 %v670, %v670
  %v931 = vunpack.c.l.b16 %v704
  %v932 = vunpack.c.l.b16 %v705
  %v933 = vunpack.c.l.b16 %v706
  %v934 = vunpack.c.l.b16 %v707
  %v935 = vunpack.c.l.b16 %v708
  %v936 = vunpack.c.l.b16 %v709
  %v937 = vunpack.c.l.b16 %v710
  %v938 = vunpack.c.l.b16 %v711
  %v939 = vunpack.c.l.b16 %v712
  %v940 = vunpack.c.l.b16 %v713
  %v941 = vunpack.c.l.b16 %v714
  %v942 = vunpack.c.l.b16 %v715
  %v943 = vunpack.c.l.b16 %v716
  %v944 = vunpack.c.l.b16 %v717
  %v945 = vunpack.c.l.b16 %v718
  %v946 = vunpack.c.l.b16 %v719
  %v947 = vpack.c.b16 %v932, %v931
  %v948 = vpack.c.b16 %v934, %v933
  %v949 = vpack.c.b16 %v936, %v935
  %v950 = vpack.c.b16 %v938, %v937
  %v951 = vpack.c.b16 %v940, %v939
  %v952 = vpack.c.b16 %v942, %v941
  %v953 = vpack.c.b16 %v944, %v943
  %v954 = vpack.c.b16 %v946, %v945
  %963 = vmatprep.subr.bf16.mxu0 0
  %964 = vmatpush1.bf16.msra.mxu0 %v947
  %965 = vmatprep.subr.bf16.mxu0 0
  %966 = vmatpush1.bf16.msra.mxu0 %v948
  %967 = vmatprep.subr.bf16.mxu0 0
  %968 = vmatpush1.bf16.msra.mxu0 %v949
  %969 = vmatprep.subr.bf16.mxu0 0
  %970 = vmatpush1.bf16.msra.mxu0 %v950
  %971 = vmatprep.subr.bf16.mxu0 0
  %972 = vmatpush1.bf16.msra.mxu0 %v951
  %973 = vmatprep.subr.bf16.mxu0 0
  %974 = vmatpush1.bf16.msra.mxu0 %v952
  %975 = vmatprep.subr.bf16.mxu0 0
  %976 = vmatpush1.bf16.msra.mxu0 %v953
  %977 = vmatprep.subr.bf16.mxu0 0
  %978 = vmatpush1.bf16.msra.mxu0 %v954
  %979 = vmatprep.subr.bf16.mxu0 0
  %980 = vmatpush1.bf16.msra.mxu0 0
  %981 = vmatprep.subr.bf16.mxu0 0
  %982 = vmatpush1.bf16.msra.mxu0 0
  %983 = vmatprep.subr.bf16.mxu0 0
  %984 = vmatpush1.bf16.msra.mxu0 0
  %985 = vmatprep.subr.bf16.mxu0 0
  %986 = vmatpush1.bf16.msra.mxu0 0
  %987 = vmatprep.subr.bf16.mxu0 0
  %988 = vmatpush1.bf16.msra.mxu0 0
  %989 = vmatprep.subr.bf16.mxu0 0
  %990 = vmatpush1.bf16.msra.mxu0 0
  %991 = vmatprep.subr.bf16.mxu0 0
  %992 = vmatpush1.bf16.msra.mxu0 0
  %993 = vmatprep.subr.bf16.mxu0 0
  %994 = vmatpush1.bf16.msra.mxu0 0
  %995 = vmatprep.mubr.bf16.mxu0 0
  %996 = vmatmul.mubr.bf16.gmra.mrb[0].mxu0 %v914
  %v997 = vpop.f32.mrb[0].mxu0
  %v998 = vadd.f32 0.0, %v997
  %v999 = vpop.f32.mrb[0].mxu0
  %v1000 = vpop.f32.mrb[0].mxu0
  %v1001 = vpop.f32.mrb[0].mxu0
  %1002 = vdwg.mxu0
  %v1003 = vadd.f32 %v909, %v998
  %v1004 = vpack.c.bf16 %v671, %v671
  %v1021 = vunpack.c.l.b16 %v720
  %v1022 = vunpack.c.l.b16 %v721
  %v1023 = vunpack.c.l.b16 %v722
  %v1024 = vunpack.c.l.b16 %v723
  %v1025 = vunpack.c.l.b16 %v724
  %v1026 = vunpack.c.l.b16 %v725
  %v1027 = vunpack.c.l.b16 %v726
  %v1028 = vunpack.c.l.b16 %v727
  %v1029 = vunpack.c.l.b16 %v728
  %v1030 = vunpack.c.l.b16 %v729
  %v1031 = vunpack.c.l.b16 %v730
  %v1032 = vunpack.c.l.b16 %v731
  %v1033 = vunpack.c.l.b16 %v732
  %v1034 = vunpack.c.l.b16 %v733
  %v1035 = vunpack.c.l.b16 %v734
  %v1036 = vunpack.c.l.b16 %v735
  %v1037 = vpack.c.b16 %v1022, %v1021
  %v1038 = vpack.c.b16 %v1024, %v1023
  %v1039 = vpack.c.b16 %v1026, %v1025
  %v1040 = vpack.c.b16 %v1028, %v1027
  %v1041 = vpack.c.b16 %v1030, %v1029
  %v1042 = vpack.c.b16 %v1032, %v1031
  %v1043 = vpack.c.b16 %v1034, %v1033
  %v1044 = vpack.c.b16 %v1036, %v1035
  %1053 = vmatprep.subr.bf16.mxu0 0
  %1054 = vmatpush1.bf16.msra.mxu0 %v1037
  %1055 = vmatprep.subr.bf16.mxu0 0
  %1056 = vmatpush1.bf16.msra.mxu0 %v1038
  %1057 = vmatprep.subr.bf16.mxu0 0
  %1058 = vmatpush1.bf16.msra.mxu0 %v1039
  %1059 = vmatprep.subr.bf16.mxu0 0
  %1060 = vmatpush1.bf16.msra.mxu0 %v1040
  %1061 = vmatprep.subr.bf16.mxu0 0
  %1062 = vmatpush1.bf16.msra.mxu0 %v1041
  %1063 = vmatprep.subr.bf16.mxu0 0
  %1064 = vmatpush1.bf16.msra.mxu0 %v1042
  %1065 = vmatprep.subr.bf16.mxu0 0
  %1066 = vmatpush1.bf16.msra.mxu0 %v1043
  %1067 = vmatprep.subr.bf16.mxu0 0
  %1068 = vmatpush1.bf16.msra.mxu0 %v1044
  %1069 = vmatprep.subr.bf16.mxu0 0
  %1070 = vmatpush1.bf16.msra.mxu0 0
  %1071 = vmatprep.subr.bf16.mxu0 0
  %1072 = vmatpush1.bf16.msra.mxu0 0
  %1073 = vmatprep.subr.bf16.mxu0 0
  %1074 = vmatpush1.bf16.msra.mxu0 0
  %1075 = vmatprep.subr.bf16.mxu0 0
  %1076 = vmatpush1.bf16.msra.mxu0 0
  %1077 = vmatprep.subr.bf16.mxu0 0
  %1078 = vmatpush1.bf16.msra.mxu0 0
  %1079 = vmatprep.subr.bf16.mxu0 0
  %1080 = vmatpush1.bf16.msra.mxu0 0
  %1081 = vmatprep.subr.bf16.mxu0 0
  %1082 = vmatpush1.bf16.msra.mxu0 0
  %1083 = vmatprep.subr.bf16.mxu0 0
  %1084 = vmatpush1.bf16.msra.mxu0 0
  %1085 = vmatprep.mubr.bf16.mxu0 0
  %1086 = vmatmul.mubr.bf16.gmra.mrb[0].mxu0 %v1004
  %v1087 = vpop.f32.mrb[0].mxu0
  %v1088 = vadd.f32 0.0, %v1087
  %v1089 = vpop.f32.mrb[0].mxu0
  %v1090 = vpop.f32.mrb[0].mxu0
  %v1091 = vpop.f32.mrb[0].mxu0
  %1092 = vdwg.mxu0
  %v1093 = vadd.f32 %v1003, %v1088
  %v1094 = vld [vmem:[%s9] sm:$0x1]
  %v1096 = vlaneseq
  %v1097 = vshrl.u32 %v1096, 7
  %v1098 = vsub.s32 0, %v1097
  %v1099 = vrot.slane %v1094, %v1098
  %v1101 = vadd.f32 %v1093, %v1099
  %v1102 = vmax.f32 %v1101, 0.0
  %v1103 = vld [vmem:[%s10] sm:$0xf]
  %v1104 = vld [vmem:[%s10 + $0x4] sm:$0xf]
  %v1105 = vld [vmem:[%s10 + $0x8] sm:$0xf]
  %v1106 = vld [vmem:[%s10 + $0xc] sm:$0xf]
  %v1107 = vld [vmem:[%s10 + $0x10] sm:$0xf]
  %v1108 = vld [vmem:[%s10 + $0x14] sm:$0xf]
  %v1109 = vld [vmem:[%s10 + $0x18] sm:$0xf]
  %v1110 = vld [vmem:[%s10 + $0x1c] sm:$0xf]
  %v1111 = vld [vmem:[%s10 + $0x20] sm:$0xf]
  %v1112 = vld [vmem:[%s10 + $0x24] sm:$0xf]
  %v1113 = vld [vmem:[%s10 + $0x28] sm:$0xf]
  %v1114 = vld [vmem:[%s10 + $0x2c] sm:$0xf]
  %v1115 = vld [vmem:[%s10 + $0x30] sm:$0xf]
  %v1116 = vld [vmem:[%s10 + $0x34] sm:$0xf]
  %v1117 = vld [vmem:[%s10 + $0x38] sm:$0xf]
  %v1118 = vld [vmem:[%s10 + $0x3c] sm:$0xf]
  %v1119 = vld [vmem:[%s10 + $0x40] sm:$0xf]
  %v1120 = vld [vmem:[%s10 + $0x44] sm:$0xf]
  %v1121 = vld [vmem:[%s10 + $0x48] sm:$0xf]
  %v1122 = vld [vmem:[%s10 + $0x4c] sm:$0xf]
  %v1123 = vld [vmem:[%s10 + $0x50] sm:$0xf]
  %v1124 = vld [vmem:[%s10 + $0x54] sm:$0xf]
  %v1125 = vld [vmem:[%s10 + $0x58] sm:$0xf]
  %v1126 = vld [vmem:[%s10 + $0x5c] sm:$0xf]
  %v1127 = vld [vmem:[%s10 + $0x60] sm:$0xf]
  %v1128 = vld [vmem:[%s10 + $0x64] sm:$0xf]
  %v1129 = vld [vmem:[%s10 + $0x68] sm:$0xf]
  %v1130 = vld [vmem:[%s10 + $0x6c] sm:$0xf]
  %v1131 = vld [vmem:[%s10 + $0x70] sm:$0xf]
  %v1132 = vld [vmem:[%s10 + $0x74] sm:$0xf]
  %v1133 = vld [vmem:[%s10 + $0x78] sm:$0xf]
  %v1134 = vld [vmem:[%s10 + $0x7c] sm:$0xf]
  %v1135 = vld [vmem:[%s10 + $0x80] sm:$0xf]
  %v1136 = vld [vmem:[%s10 + $0x84] sm:$0xf]
  %v1137 = vld [vmem:[%s10 + $0x88] sm:$0xf]
  %v1138 = vld [vmem:[%s10 + $0x8c] sm:$0xf]
  %v1139 = vld [vmem:[%s10 + $0x90] sm:$0xf]
  %v1140 = vld [vmem:[%s10 + $0x94] sm:$0xf]
  %v1141 = vld [vmem:[%s10 + $0x98] sm:$0xf]
  %v1142 = vld [vmem:[%s10 + $0x9c] sm:$0xf]
  %v1143 = vld [vmem:[%s10 + $0xa0] sm:$0xf]
  %v1144 = vld [vmem:[%s10 + $0xa4] sm:$0xf]
  %v1145 = vld [vmem:[%s10 + $0xa8] sm:$0xf]
  %v1146 = vld [vmem:[%s10 + $0xac] sm:$0xf]
  %v1147 = vld [vmem:[%s10 + $0xb0] sm:$0xf]
  %v1148 = vld [vmem:[%s10 + $0xb4] sm:$0xf]
  %v1149 = vld [vmem:[%s10 + $0xb8] sm:$0xf]
  %v1150 = vld [vmem:[%s10 + $0xbc] sm:$0xf]
  %v1151 = vld [vmem:[%s10 + $0xc0] sm:$0xf]
  %v1152 = vld [vmem:[%s10 + $0xc4] sm:$0xf]
  %v1153 = vld [vmem:[%s10 + $0xc8] sm:$0xf]
  %v1154 = vld [vmem:[%s10 + $0xcc] sm:$0xf]
  %v1155 = vld [vmem:[%s10 + $0xd0] sm:$0xf]
  %v1156 = vld [vmem:[%s10 + $0xd4] sm:$0xf]
  %v1157 = vld [vmem:[%s10 + $0xd8] sm:$0xf]
  %v1158 = vld [vmem:[%s10 + $0xdc] sm:$0xf]
  %v1159 = vld [vmem:[%s10 + $0xe0] sm:$0xf]
  %v1160 = vld [vmem:[%s10 + $0xe4] sm:$0xf]
  %v1161 = vld [vmem:[%s10 + $0xe8] sm:$0xf]
  %v1162 = vld [vmem:[%s10 + $0xec] sm:$0xf]
  %v1163 = vld [vmem:[%s10 + $0xf0] sm:$0xf]
  %v1164 = vld [vmem:[%s10 + $0xf4] sm:$0xf]
  %v1165 = vld [vmem:[%s10 + $0xf8] sm:$0xf]
  %v1166 = vld [vmem:[%s10 + $0xfc] sm:$0xf]
  %v1167 = vld [vmem:[%s10 + $0x100] sm:$0xf]
  %v1168 = vld [vmem:[%s10 + $0x104] sm:$0xf]
  %v1169 = vld [vmem:[%s10 + $0x108] sm:$0xf]
  %v1170 = vld [vmem:[%s10 + $0x10c] sm:$0xf]
  %v1171 = vld [vmem:[%s10 + $0x110] sm:$0xf]
  %v1172 = vld [vmem:[%s10 + $0x114] sm:$0xf]
  %v1173 = vld [vmem:[%s10 + $0x118] sm:$0xf]
  %v1174 = vld [vmem:[%s10 + $0x11c] sm:$0xf]
  %v1191 = vunpack.c.l.b16 %v1119
  %v1192 = vunpack.c.l.b16 %v1120
  %v1193 = vunpack.c.l.b16 %v1121
  %v1194 = vunpack.c.l.b16 %v1122
  %v1195 = vunpack.c.l.b16 %v1123
  %v1196 = vunpack.c.l.b16 %v1124
  %v1197 = vunpack.c.l.b16 %v1125
  %v1198 = vunpack.c.l.b16 %v1126
  %v1199 = vunpack.c.l.b16 %v1127
  %v1200 = vunpack.c.l.b16 %v1128
  %v1201 = vunpack.c.l.b16 %v1129
  %v1202 = vunpack.c.l.b16 %v1130
  %v1203 = vunpack.c.l.b16 %v1131
  %v1204 = vunpack.c.l.b16 %v1132
  %v1205 = vunpack.c.l.b16 %v1133
  %v1206 = vunpack.c.l.b16 %v1134
  %v1207 = vpack.c.b16 %v1192, %v1191
  %v1208 = vpack.c.b16 %v1194, %v1193
  %v1209 = vpack.c.b16 %v1196, %v1195
  %v1210 = vpack.c.b16 %v1198, %v1197
  %v1211 = vpack.c.b16 %v1200, %v1199
  %v1212 = vpack.c.b16 %v1202, %v1201
  %v1213 = vpack.c.b16 %v1204, %v1203
  %v1214 = vpack.c.b16 %v1206, %v1205
  %1223 = vmatprep.subr.bf16.mxu0 0
  %1224 = vmatpush1.bf16.msra.mxu0 %v1207
  %1225 = vmatprep.subr.bf16.mxu0 0
  %1226 = vmatpush1.bf16.msra.mxu0 %v1208
  %1227 = vmatprep.subr.bf16.mxu0 0
  %1228 = vmatpush1.bf16.msra.mxu0 %v1209
  %1229 = vmatprep.subr.bf16.mxu0 0
  %1230 = vmatpush1.bf16.msra.mxu0 %v1210
  %1231 = vmatprep.subr.bf16.mxu0 0
  %1232 = vmatpush1.bf16.msra.mxu0 %v1211
  %1233 = vmatprep.subr.bf16.mxu0 0
  %1234 = vmatpush1.bf16.msra.mxu0 %v1212
  %1235 = vmatprep.subr.bf16.mxu0 0
  %1236 = vmatpush1.bf16.msra.mxu0 %v1213
  %1237 = vmatprep.subr.bf16.mxu0 0
  %1238 = vmatpush1.bf16.msra.mxu0 %v1214
  %1239 = vmatprep.subr.bf16.mxu0 0
  %1240 = vmatpush1.bf16.msra.mxu0 0
  %1241 = vmatprep.subr.bf16.mxu0 0
  %1242 = vmatpush1.bf16.msra.mxu0 0
  %1243 = vmatprep.subr.bf16.mxu0 0
  %1244 = vmatpush1.bf16.msra.mxu0 0
  %1245 = vmatprep.subr.bf16.mxu0 0
  %1246 = vmatpush1.bf16.msra.mxu0 0
  %1247 = vmatprep.subr.bf16.mxu0 0
  %1248 = vmatpush1.bf16.msra.mxu0 0
  %1249 = vmatprep.subr.bf16.mxu0 0
  %1250 = vmatpush1.bf16.msra.mxu0 0
  %1251 = vmatprep.subr.bf16.mxu0 0
  %1252 = vmatpush1.bf16.msra.mxu0 0
  %1253 = vmatprep.subr.bf16.mxu0 0
  %1254 = vmatpush1.bf16.msra.mxu0 0
  %1255 = vmatprep.mubr.bf16.mxu0 0
  %1256 = vmatmul.mubr.bf16.gmra.mrb[0].mxu0 %v737
  %v1257 = vpop.f32.mrb[0].mxu0
  %v1258 = vadd.f32 0.0, %v1257
  %v1259 = vpop.f32.mrb[0].mxu0
  %v1260 = vpop.f32.mrb[0].mxu0
  %v1261 = vpop.f32.mrb[0].mxu0
  %1262 = vdwg.mxu0
  %v1279 = vunpack.c.l.b16 %v1103
  %v1280 = vunpack.c.l.b16 %v1104
  %v1281 = vunpack.c.l.b16 %v1105
  %v1282 = vunpack.c.l.b16 %v1106
  %v1283 = vunpack.c.l.b16 %v1107
  %v1284 = vunpack.c.l.b16 %v1108
  %v1285 = vunpack.c.l.b16 %v1109
  %v1286 = vunpack.c.l.b16 %v1110
  %v1287 = vunpack.c.l.b16 %v1111
  %v1288 = vunpack.c.l.b16 %v1112
  %v1289 = vunpack.c.l.b16 %v1113
  %v1290 = vunpack.c.l.b16 %v1114
  %v1291 = vunpack.c.l.b16 %v1115
  %v1292 = vunpack.c.l.b16 %v1116
  %v1293 = vunpack.c.l.b16 %v1117
  %v1294 = vunpack.c.l.b16 %v1118
  %v1295 = vpack.c.b16 %v1280, %v1279
  %v1296 = vpack.c.b16 %v1282, %v1281
  %v1297 = vpack.c.b16 %v1284, %v1283
  %v1298 = vpack.c.b16 %v1286, %v1285
  %v1299 = vpack.c.b16 %v1288, %v1287
  %v1300 = vpack.c.b16 %v1290, %v1289
  %v1301 = vpack.c.b16 %v1292, %v1291
  %v1302 = vpack.c.b16 %v1294, %v1293
  %1311 = vmatprep.subr.bf16.mxu0 0
  %1312 = vmatpush1.bf16.msra.mxu0 %v1295
  %1313 = vmatprep.subr.bf16.mxu0 0
  %1314 = vmatpush1.bf16.msra.mxu0 %v1296
  %1315 = vmatprep.subr.bf16.mxu0 0
  %1316 = vmatpush1.bf16.msra.mxu0 %v1297
  %1317 = vmatprep.subr.bf16.mxu0 0
  %1318 = vmatpush1.bf16.msra.mxu0 %v1298
  %1319 = vmatprep.subr.bf16.mxu0 0
  %1320 = vmatpush1.bf16.msra.mxu0 %v1299
  %1321 = vmatprep.subr.bf16.mxu0 0
  %1322 = vmatpush1.bf16.msra.mxu0 %v1300
  %1323 = vmatprep.subr.bf16.mxu0 0
  %1324 = vmatpush1.bf16.msra.mxu0 %v1301
  %1325 = vmatprep.subr.bf16.mxu0 0
  %1326 = vmatpush1.bf16.msra.mxu0 %v1302
  %1327 = vmatprep.subr.bf16.mxu0 0
  %1328 = vmatpush1.bf16.msra.mxu0 0
  %1329 = vmatprep.subr.bf16.mxu0 0
  %1330 = vmatpush1.bf16.msra.mxu0 0
  %1331 = vmatprep.subr.bf16.mxu0 0
  %1332 = vmatpush1.bf16.msra.mxu0 0
  %1333 = vmatprep.subr.bf16.mxu0 0
  %1334 = vmatpush1.bf16.msra.mxu0 0
  %1335 = vmatprep.subr.bf16.mxu0 0
  %1336 = vmatpush1.bf16.msra.mxu0 0
  %1337 = vmatprep.subr.bf16.mxu0 0
  %1338 = vmatpush1.bf16.msra.mxu0 0
  %1339 = vmatprep.subr.bf16.mxu0 0
  %1340 = vmatpush1.bf16.msra.mxu0 0
  %1341 = vmatprep.subr.bf16.mxu0 0
  %1342 = vmatpush1.bf16.msra.mxu0 0
  %1343 = vmatprep.mubr.bf16.mxu0 0
  %1344 = vmatmul.mubr.bf16.gmra.mrb[0].mxu0 %v736
  %v1345 = vpop.f32.mrb[0].mxu0
  %v1346 = vadd.f32 %v1258, %v1345
  %v1347 = vpop.f32.mrb[0].mxu0
  %v1348 = vpop.f32.mrb[0].mxu0
  %v1349 = vpop.f32.mrb[0].mxu0
  %1350 = vdwg.mxu0
  %v1367 = vunpack.c.l.b16 %v1135
  %v1368 = vunpack.c.l.b16 %v1136
  %v1369 = vunpack.c.l.b16 %v1137
  %v1370 = vunpack.c.l.b16 %v1138
  %v1371 = vunpack.c.l.b16 %v1139
  %v1372 = vunpack.c.l.b16 %v1140
  %v1373 = vunpack.c.l.b16 %v1141
  %v1374 = vunpack.c.l.b16 %v1142
  %v1375 = vunpack.c.l.b16 %v1143
  %v1376 = vunpack.c.l.b16 %v1144
  %v1377 = vunpack.c.l.b16 %v1145
  %v1378 = vunpack.c.l.b16 %v1146
  %v1379 = vunpack.c.l.b16 %v1147
  %v1380 = vunpack.c.l.b16 %v1148
  %v1381 = vunpack.c.l.b16 %v1149
  %v1382 = vunpack.c.l.b16 %v1150
  %v1383 = vpack.c.b16 %v1368, %v1367
  %v1384 = vpack.c.b16 %v1370, %v1369
  %v1385 = vpack.c.b16 %v1372, %v1371
  %v1386 = vpack.c.b16 %v1374, %v1373
  %v1387 = vpack.c.b16 %v1376, %v1375
  %v1388 = vpack.c.b16 %v1378, %v1377
  %v1389 = vpack.c.b16 %v1380, %v1379
  %v1390 = vpack.c.b16 %v1382, %v1381
  %1399 = vmatprep.subr.bf16.mxu0 0
  %1400 = vmatpush1.bf16.msra.mxu0 %v1383
  %1401 = vmatprep.subr.bf16.mxu0 0
  %1402 = vmatpush1.bf16.msra.mxu0 %v1384
  %1403 = vmatprep.subr.bf16.mxu0 0
  %1404 = vmatpush1.bf16.msra.mxu0 %v1385
  %1405 = vmatprep.subr.bf16.mxu0 0
  %1406 = vmatpush1.bf16.msra.mxu0 %v1386
  %1407 = vmatprep.subr.bf16.mxu0 0
  %1408 = vmatpush1.bf16.msra.mxu0 %v1387
  %1409 = vmatprep.subr.bf16.mxu0 0
  %1410 = vmatpush1.bf16.msra.mxu0 %v1388
  %1411 = vmatprep.subr.bf16.mxu0 0
  %1412 = vmatpush1.bf16.msra.mxu0 %v1389
  %1413 = vmatprep.subr.bf16.mxu0 0
  %1414 = vmatpush1.bf16.msra.mxu0 %v1390
  %1415 = vmatprep.subr.bf16.mxu0 0
  %1416 = vmatpush1.bf16.msra.mxu0 0
  %1417 = vmatprep.subr.bf16.mxu0 0
  %1418 = vmatpush1.bf16.msra.mxu0 0
  %1419 = vmatprep.subr.bf16.mxu0 0
  %1420 = vmatpush1.bf16.msra.mxu0 0
  %1421 = vmatprep.subr.bf16.mxu0 0
  %1422 = vmatpush1.bf16.msra.mxu0 0
  %1423 = vmatprep.subr.bf16.mxu0 0
  %1424 = vmatpush1.bf16.msra.mxu0 0
  %1425 = vmatprep.subr.bf16.mxu0 0
  %1426 = vmatpush1.bf16.msra.mxu0 0
  %1427 = vmatprep.subr.bf16.mxu0 0
  %1428 = vmatpush1.bf16.msra.mxu0 0
  %1429 = vmatprep.subr.bf16.mxu0 0
  %1430 = vmatpush1.bf16.msra.mxu0 0
  %1431 = vmatprep.mubr.bf16.mxu0 0
  %1432 = vmatmul.mubr.bf16.gmra.mrb[0].mxu0 %v914
  %v1433 = vpop.f32.mrb[0].mxu0
  %v1434 = vadd.f32 0.0, %v1433
  %v1435 = vpop.f32.mrb[0].mxu0
  %v1436 = vpop.f32.mrb[0].mxu0
  %v1437 = vpop.f32.mrb[0].mxu0
  %1438 = vdwg.mxu0
  %v1439 = vadd.f32 %v1346, %v1434
  %v1456 = vunpack.c.l.b16 %v1151
  %v1457 = vunpack.c.l.b16 %v1152
  %v1458 = vunpack.c.l.b16 %v1153
  %v1459 = vunpack.c.l.b16 %v1154
  %v1460 = vunpack.c.l.b16 %v1155
  %v1461 = vunpack.c.l.b16 %v1156
  %v1462 = vunpack.c.l.b16 %v1157
  %v1463 = vunpack.c.l.b16 %v1158
  %v1464 = vunpack.c.l.b16 %v1159
  %v1465 = vunpack.c.l.b16 %v1160
  %v1466 = vunpack.c.l.b16 %v1161
  %v1467 = vunpack.c.l.b16 %v1162
  %v1468 = vunpack.c.l.b16 %v1163
  %v1469 = vunpack.c.l.b16 %v1164
  %v1470 = vunpack.c.l.b16 %v1165
  %v1471 = vunpack.c.l.b16 %v1166
  %v1472 = vpack.c.b16 %v1457, %v1456
  %v1473 = vpack.c.b16 %v1459, %v1458
  %v1474 = vpack.c.b16 %v1461, %v1460
  %v1475 = vpack.c.b16 %v1463, %v1462
  %v1476 = vpack.c.b16 %v1465, %v1464
  %v1477 = vpack.c.b16 %v1467, %v1466
  %v1478 = vpack.c.b16 %v1469, %v1468
  %v1479 = vpack.c.b16 %v1471, %v1470
  %1488 = vmatprep.subr.bf16.mxu0 0
  %1489 = vmatpush1.bf16.msra.mxu0 %v1472
  %1490 = vmatprep.subr.bf16.mxu0 0
  %1491 = vmatpush1.bf16.msra.mxu0 %v1473
  %1492 = vmatprep.subr.bf16.mxu0 0
  %1493 = vmatpush1.bf16.msra.mxu0 %v1474
  %1494 = vmatprep.subr.bf16.mxu0 0
  %1495 = vmatpush1.bf16.msra.mxu0 %v1475
  %1496 = vmatprep.subr.bf16.mxu0 0
  %1497 = vmatpush1.bf16.msra.mxu0 %v1476
  %1498 = vmatprep.subr.bf16.mxu0 0
  %1499 = vmatpush1.bf16.msra.mxu0 %v1477
  %1500 = vmatprep.subr.bf16.mxu0 0
  %1501 = vmatpush1.bf16.msra.mxu0 %v1478
  %1502 = vmatprep.subr.bf16.mxu0 0
  %1503 = vmatpush1.bf16.msra.mxu0 %v1479
  %1504 = vmatprep.subr.bf16.mxu0 0
  %1505 = vmatpush1.bf16.msra.mxu0 0
  %1506 = vmatprep.subr.bf16.mxu0 0
  %1507 = vmatpush1.bf16.msra.mxu0 0
  %1508 = vmatprep.subr.bf16.mxu0 0
  %1509 = vmatpush1.bf16.msra.mxu0 0
  %1510 = vmatprep.subr.bf16.mxu0 0
  %1511 = vmatpush1.bf16.msra.mxu0 0
  %1512 = vmatprep.subr.bf16.mxu0 0
  %1513 = vmatpush1.bf16.msra.mxu0 0
  %1514 = vmatprep.subr.bf16.mxu0 0
  %1515 = vmatpush1.bf16.msra.mxu0 0
  %1516 = vmatprep.subr.bf16.mxu0 0
  %1517 = vmatpush1.bf16.msra.mxu0 0
  %1518 = vmatprep.subr.bf16.mxu0 0
  %1519 = vmatpush1.bf16.msra.mxu0 0
  %1520 = vmatprep.mubr.bf16.mxu0 0
  %1521 = vmatmul.mubr.bf16.gmra.mrb[0].mxu0 %v1004
  %v1522 = vpop.f32.mrb[0].mxu0
  %v1523 = vadd.f32 0.0, %v1522
  %v1524 = vpop.f32.mrb[0].mxu0
  %v1525 = vpop.f32.mrb[0].mxu0
  %v1526 = vpop.f32.mrb[0].mxu0
  %1527 = vdwg.mxu0
  %v1528 = vadd.f32 %v1439, %v1523
  %v1529 = vpack.c.bf16 %v1102, %v1102
  %v1538 = vunpack.c.l.b16 %v1167
  %v1539 = vunpack.c.l.b16 %v1168
  %v1540 = vunpack.c.l.b16 %v1169
  %v1541 = vunpack.c.l.b16 %v1170
  %v1542 = vunpack.c.l.b16 %v1171
  %v1543 = vunpack.c.l.b16 %v1172
  %v1544 = vunpack.c.l.b16 %v1173
  %v1545 = vunpack.c.l.b16 %v1174
  %v1546 = vpack.c.b16 %v1539, %v1538
  %v1547 = vpack.c.b16 %v1541, %v1540
  %v1548 = vpack.c.b16 %v1543, %v1542
  %v1549 = vpack.c.b16 %v1545, %v1544
  %vm1554 = vcmask 523264
  %v1556 = vsel %vm1554, %v1529, 0
  %1558 = vmatprep.subr.bf16.mxu0 0
  %1559 = vmatpush1.bf16.msra.mxu0 %v1546
  %1560 = vmatprep.subr.bf16.mxu0 0
  %1561 = vmatpush1.bf16.msra.mxu0 %v1547
  %1562 = vmatprep.subr.bf16.mxu0 0
  %1563 = vmatpush1.bf16.msra.mxu0 %v1548
  %1564 = vmatprep.subr.bf16.mxu0 0
  %1565 = vmatpush1.bf16.msra.mxu0 %v1549
  %1566 = vmatprep.subr.bf16.mxu0 0
  %1567 = vmatpush1.bf16.msra.mxu0 0
  %1568 = vmatprep.subr.bf16.mxu0 0
  %1569 = vmatpush1.bf16.msra.mxu0 0
  %1570 = vmatprep.subr.bf16.mxu0 0
  %1571 = vmatpush1.bf16.msra.mxu0 0
  %1572 = vmatprep.subr.bf16.mxu0 0
  %1573 = vmatpush1.bf16.msra.mxu0 0
  %1574 = vmatprep.subr.bf16.mxu0 0
  %1575 = vmatpush1.bf16.msra.mxu0 0
  %1576 = vmatprep.subr.bf16.mxu0 0
  %1577 = vmatpush1.bf16.msra.mxu0 0
  %1578 = vmatprep.subr.bf16.mxu0 0
  %1579 = vmatpush1.bf16.msra.mxu0 0
  %1580 = vmatprep.subr.bf16.mxu0 0
  %1581 = vmatpush1.bf16.msra.mxu0 0
  %1582 = vmatprep.subr.bf16.mxu0 0
  %1583 = vmatpush1.bf16.msra.mxu0 0
  %1584 = vmatprep.subr.bf16.mxu0 0
  %1585 = vmatpush1.bf16.msra.mxu0 0
  %1586 = vmatprep.subr.bf16.mxu0 0
  %1587 = vmatpush1.bf16.msra.mxu0 0
  %1588 = vmatprep.subr.bf16.mxu0 0
  %1589 = vmatpush1.bf16.msra.mxu0 0
  %1590 = vmatprep.mubr.bf16.mxu0 0
  %1591 = vmatmul.mubr.bf16.gmra.mrb[0].mxu0 %v1556
  %v1592 = vpop.f32.mrb[0].mxu0
  %v1593 = vadd.f32 0.0, %v1592
  %v1594 = vpop.f32.mrb[0].mxu0
  %v1595 = vpop.f32.mrb[0].mxu0
  %v1596 = vpop.f32.mrb[0].mxu0
  %1597 = vdwg.mxu0
  %v1598 = vadd.f32 %v1528, %v1593
  %v1599 = vld [vmem:[%s11] sm:$0x1]
  %v1601 = vlaneseq
  %v1602 = vshrl.u32 %v1601, 7
  %v1603 = vsub.s32 0, %v1602
  %v1604 = vrot.slane %v1599, %v1603
  %v1606 = vadd.f32 %v1598, %v1604
  %v1607 = vmax.f32 %v1606, 0.0
  %v1608 = vld [vmem:[%s12] sm:$0xf]
  %v1609 = vld [vmem:[%s12 + $0x4] sm:$0xf]
  %v1610 = vld [vmem:[%s12 + $0x8] sm:$0xf]
  %v1611 = vld [vmem:[%s12 + $0xc] sm:$0xf]
  %v1612 = vld [vmem:[%s12 + $0x10] sm:$0xf]
  %v1613 = vld [vmem:[%s12 + $0x14] sm:$0xf]
  %v1614 = vld [vmem:[%s12 + $0x18] sm:$0xf]
  %v1615 = vld [vmem:[%s12 + $0x1c] sm:$0xf]
  %v1616 = vpack.c.bf16 %v1607, %v1607
  %v1617 = vld [vmem:[%s13] sm:$0x1]
  %v1619 = vlaneseq
  %v1620 = vshrl.u32 %v1619, 7
  %v1621 = vsub.s32 0, %v1620
  %v1622 = vrot.slane %v1617, %v1621
  %v1632 = vunpack.c.l.b16 %v1608
  %v1633 = vunpack.c.l.b16 %v1609
  %v1634 = vunpack.c.l.b16 %v1610
  %v1635 = vunpack.c.l.b16 %v1611
  %v1636 = vunpack.c.l.b16 %v1612
  %v1637 = vunpack.c.l.b16 %v1613
  %v1638 = vunpack.c.l.b16 %v1614
  %v1639 = vunpack.c.l.b16 %v1615
  %v1640 = vpack.c.b16 %v1633, %v1632
  %v1641 = vpack.c.b16 %v1635, %v1634
  %v1642 = vpack.c.b16 %v1637, %v1636
  %v1643 = vpack.c.b16 %v1639, %v1638
  %v1649 = vsel %vm1554, %v1616, 0
  %1651 = vmatprep.subr.bf16.mxu0 0
  %1652 = vmatpush1.bf16.msra.mxu0 %v1640
  %1653 = vmatprep.subr.bf16.mxu0 0
  %1654 = vmatpush1.bf16.msra.mxu0 %v1641
  %1655 = vmatprep.subr.bf16.mxu0 0
  %1656 = vmatpush1.bf16.msra.mxu0 %v1642
  %1657 = vmatprep.subr.bf16.mxu0 0
  %1658 = vmatpush1.bf16.msra.mxu0 %v1643
  %1659 = vmatprep.subr.bf16.mxu0 0
  %1660 = vmatpush1.bf16.msra.mxu0 0
  %1661 = vmatprep.subr.bf16.mxu0 0
  %1662 = vmatpush1.bf16.msra.mxu0 0
  %1663 = vmatprep.subr.bf16.mxu0 0
  %1664 = vmatpush1.bf16.msra.mxu0 0
  %1665 = vmatprep.subr.bf16.mxu0 0
  %1666 = vmatpush1.bf16.msra.mxu0 0
  %1667 = vmatprep.subr.bf16.mxu0 0
  %1668 = vmatpush1.bf16.msra.mxu0 0
  %1669 = vmatprep.subr.bf16.mxu0 0
  %1670 = vmatpush1.bf16.msra.mxu0 0
  %1671 = vmatprep.subr.bf16.mxu0 0
  %1672 = vmatpush1.bf16.msra.mxu0 0
  %1673 = vmatprep.subr.bf16.mxu0 0
  %1674 = vmatpush1.bf16.msra.mxu0 0
  %1675 = vmatprep.subr.bf16.mxu0 0
  %1676 = vmatpush1.bf16.msra.mxu0 0
  %1677 = vmatprep.subr.bf16.mxu0 0
  %1678 = vmatpush1.bf16.msra.mxu0 0
  %1679 = vmatprep.subr.bf16.mxu0 0
  %1680 = vmatpush1.bf16.msra.mxu0 0
  %1681 = vmatprep.subr.bf16.mxu0 0
  %1682 = vmatpush1.bf16.msra.mxu0 0
  %1683 = vmatprep.mubr.bf16.mxu0 0
  %1684 = vmatmul.mubr.bf16.gmra.mrb[0].mxu0 %v1649
  %v1685 = vpop.f32.mrb[0].mxu0
  %v1686 = vadd.f32 %v1622, %v1685
  %v1687 = vpop.f32.mrb[0].mxu0
  %v1688 = vpop.f32.mrb[0].mxu0
  %v1689 = vpop.f32.mrb[0].mxu0
  %1690 = vdwg.mxu0
  %1691 = vst [vmem:[%s14] sm:$0xff] %v1686
  // Predicated region
  $region58: #{nn4emo_forward.1} parent=0 // pred_check
    _
  $region59: #{nn4emo_forward.1} parent=0 // pred_check_branch
    %1693 = sbr.rel (0) target = $region61
  $region60: #{nn4emo_forward.1} parent=0 // pred_region
    _
  $region61: #{nn4emo_forward.1} parent=0 // pred_fallthru
    _
  // Predicated region
  $region62: #{nn4emo_forward.1} parent=0 // pred_check
    _
  $region63: #{nn4emo_forward.1} parent=0 // pred_check_branch
    %1695 = sbr.rel (0) target = $region65
  $region64: #{nn4emo_forward.1} parent=0 // pred_region
    _
  $region65: #{nn4emo_forward.1} parent=0 // pred_fallthru
    _

</llo_original>
